<compile_context>
chip_gen: v5e
topology: v5e:2x2
jax: 0.10.0
libtpu: 0.0.40
codegen_flags: <defaults>
</compile_context>

<pallas_src>
import functools

import jax
import jax.numpy as jnp
from jax.experimental import pallas as pl
from jax.experimental.pallas import tpu as pltpu

IN = 28 * 28          # 784
HID = 512
OUT = 10
OUT_PAD = 128         # lane-dense padded output width
NEG_INF = -1e30       # mask value for padded logit columns (requires fp32 logits in-kernel)


def mlp_kernel(x_ref, w1_ref, b1_ref, w2_ref, b2_ref, w3_ref, b3_ref, o_ref):
    # x tile arrives fp32; cast to bf16 in-kernel (VPU filler under the MXU).
    x = x_ref[...].astype(jnp.bfloat16)

    # fc1 + relu (bf16 operands, fp32 MXU accumulation)
    h1 = jnp.dot(x, w1_ref[...], preferred_element_type=jnp.float32) + b1_ref[...]
    h1 = jnp.maximum(h1, 0.0).astype(jnp.bfloat16)

    # fc2 + relu
    h2 = jnp.dot(h1, w2_ref[...], preferred_element_type=jnp.float32) + b2_ref[...]
    h2 = jnp.maximum(h2, 0.0).astype(jnp.bfloat16)

    # fc3 + softmax over the (padded) feature axis.
    # NOTE: logits / bias add MUST stay fp32 so the -1e30 pad bias cleanly underflows to
    # exp(...) == 0 for the 118 padded columns (do not move this math to bf16).
    logits = jnp.dot(h2, w3_ref[...], preferred_element_type=jnp.float32) + b3_ref[...]
    m = jnp.max(logits, axis=-1, keepdims=True)
    e = jnp.exp(logits - m)
    s = jnp.sum(e, axis=-1, keepdims=True)
    o_ref[...] = (e * pl.reciprocal(s, approx=True)).astype(o_ref.dtype)


def prepare_params(params):
    """Cast/pad fp32 [in,out] params into the kernel layout (bf16 weights, fp32 biases).

    Call ONCE and reuse the result across forward calls; re-doing this per call costs
    ~3 MB of fp32 reads + ~1.6 MB of bf16 writes of un-hidden XLA work per inference.
    """
    w1, b1, w2, b2, w3, b3 = params
    w1p = w1.astype(jnp.bfloat16)                                        # [784, 512]
    w2p = w2.astype(jnp.bfloat16)                                        # [512, 512]
    w3p = (jnp.zeros((HID, OUT_PAD), jnp.float32)
           .at[:, :OUT].set(w3).astype(jnp.bfloat16))                    # [512, 128]
    # Padded logit columns get bias -1e30 -> exp underflows to 0 (fp32 logits required).
    b3p = jnp.full((1, OUT_PAD), NEG_INF, jnp.float32).at[:, :OUT].set(b3)
    return (w1p, b1.astype(jnp.float32),
            w2p, b2.astype(jnp.float32),
            w3p, b3p)


def _round_up(n, m):
    return ((n + m - 1) // m) * m


@functools.partial(jax.jit, static_argnames=("batch_tile",))
def mnist_net_forward(x, prepared_params, batch_tile=None):
    """x: [B,1,28,28] or [B,28,28]; flattened to [B,784] like x.view(-1, 784).

    `prepared_params` must come from prepare_params() (hoisted, reusable buffers).
    batch_tile=None picks up to 256 (multiple of 16); pass an explicit tile to force an
    even >=2-step grid on v7x's two TensorCores for large batches.
    """
    w1p, b1, w2p, b2, w3p, b3p = prepared_params

    x2d = x.reshape(-1, IN).astype(jnp.float32)
    B = x2d.shape[0]

    if batch_tile is None:
        tb = min(256, _round_up(B, 16))
    else:
        tb = _round_up(int(batch_tile), 16)

    # Only batch rows are padded (no 784 -> 896 contraction padding, no wrapper bf16 copy).
    B_pad = _round_up(B, tb)
    if B_pad != B:
        x2d = jnp.pad(x2d, ((0, B_pad - B), (0, 0)))

    grid = (B_pad // tb,)
    out = pl.pallas_call(
        mlp_kernel,
        out_shape=jax.ShapeDtypeStruct((B_pad, OUT_PAD), jnp.bfloat16),
        grid_spec=pltpu.PrefetchScalarGridSpec(
            num_scalar_prefetch=0,
            grid=grid,
            in_specs=[
                pl.BlockSpec((tb, IN), lambda i: (i, 0)),        # x tile (fp32, cast in-kernel)
                pl.BlockSpec((IN, HID), lambda i: (0, 0)),       # w1 (VMEM-resident)
                pl.BlockSpec((1, HID), lambda i: (0, 0)),        # b1
                pl.BlockSpec((HID, HID), lambda i: (0, 0)),      # w2
                pl.BlockSpec((1, HID), lambda i: (0, 0)),        # b2
                pl.BlockSpec((HID, OUT_PAD), lambda i: (0, 0)),  # w3 (padded to 128 lanes)
                pl.BlockSpec((1, OUT_PAD), lambda i: (0, 0)),    # b3 (-1e30 in pad lanes)
            ],
            out_specs=pl.BlockSpec((tb, OUT_PAD), lambda i: (i, 0)),
        ),
        compiler_params=pltpu.CompilerParams(
            dimension_semantics=("parallel",),
        ),
    )(x2d, w1p, b1, w2p, b2, w3p, b3p)

    return out[:B, :OUT].astype(jnp.float32)


def init_params(key):
    """Deterministic init mimicking PyTorch Linear default (uniform ±1/sqrt(fan_in))."""
    def linear(k, fan_in, fan_out):
        kw, kb = jax.random.split(k)
        bound = 1.0 / (fan_in ** 0.5)
        # stored as [in, out] so the forward does x @ W (== x @ W_pt.T)
        w = jax.random.uniform(kw, (fan_in, fan_out), jnp.float32, -bound, bound)
        b = jax.random.uniform(kb, (1, fan_out), jnp.float32, -bound, bound)
        return w, b

    k1, k2, k3 = jax.random.split(key, 3)
    w1, b1 = linear(k1, IN, HID)
    w2, b2 = linear(k2, HID, HID)
    w3, b3 = linear(k3, HID, OUT)
    return (w1, b1, w2, b2, w3, b3)


def reference_forward(x, params):
    """Pure fp32 JAX reference matching the PyTorch module."""
    w1, b1, w2, b2, w3, b3 = params
    x2d = x.reshape(-1, IN).astype(jnp.float32)
    h1 = jax.nn.relu(x2d @ w1 + b1)
    h2 = jax.nn.relu(h1 @ w2 + b2)
    return jax.nn.softmax(h2 @ w3 + b3, axis=1)


if __name__ == "__main__":
    key = jax.random.PRNGKey(0)
    kx, kp = jax.random.split(key)

    # Small MNIST-style batch; batch_tile=16 -> 3 grid steps + batch padding are exercised.
    B = 40
    x = jax.random.normal(kx, (B, 1, 28, 28), jnp.float32)
    params = init_params(kp)

    # Hoisted weight preparation: done once, reused by every forward call.
    prepped = jax.block_until_ready(prepare_params(params))

    out = mnist_net_forward(x, prepped, batch_tile=16)
    out = jax.block_until_ready(out)

    ref = reference_forward(x, params)
    assert out.shape == (B, OUT), f"bad output shape {out.shape}"
    # bf16 matmuls + bf16 output store + approx reciprocal -> probability-scale tolerance.
    assert jnp.allclose(out, ref, atol=2e-2, rtol=2e-2), "mismatch vs. pure-JAX fp32 reference"
    assert jnp.allclose(jnp.sum(out, axis=1), 1.0, atol=1e-2), "softmax rows must sum to ~1"

    print("KERNEL_OK")
</pallas_src>

<mosaic_0001>
module attributes {stable_mosaic.version = 11 : i64} {
  func.func @mlp_kernel(%arg0: i32, %arg1: memref<16x784xf32, #tpu.memory_space<vmem>>, %arg2: memref<784x512xbf16, #tpu.memory_space<vmem>>, %arg3: memref<1x512xf32, #tpu.memory_space<vmem>>, %arg4: memref<512x512xbf16, #tpu.memory_space<vmem>>, %arg5: memref<1x512xf32, #tpu.memory_space<vmem>>, %arg6: memref<512x128xbf16, #tpu.memory_space<vmem>>, %arg7: memref<1x128xf32, #tpu.memory_space<vmem>>, %arg8: memref<16x128xbf16, #tpu.memory_space<vmem>>) attributes {dimension_semantics = [#tpu.dimension_semantics<parallel>], iteration_bounds = array<i64: 3>, scalar_prefetch = 0 : i64, scratch_operands = 0 : i64, tpu.core_type = #tpu.core_type<tc>, window_params = [{transform_indices = @transform_0, window_bounds = array<i64: 16, 784>}, {pipeline_mode = #tpu.pipeline_mode<synchronous>, transform_indices = @transform_1, window_bounds = array<i64: 784, 512>}, {pipeline_mode = #tpu.pipeline_mode<synchronous>, transform_indices = @transform_2, window_bounds = array<i64: 1, 512>}, {pipeline_mode = #tpu.pipeline_mode<synchronous>, transform_indices = @transform_3, window_bounds = array<i64: 512, 512>}, {pipeline_mode = #tpu.pipeline_mode<synchronous>, transform_indices = @transform_4, window_bounds = array<i64: 1, 512>}, {pipeline_mode = #tpu.pipeline_mode<synchronous>, transform_indices = @transform_5, window_bounds = array<i64: 512, 128>}, {pipeline_mode = #tpu.pipeline_mode<synchronous>, transform_indices = @transform_6, window_bounds = array<i64: 1, 128>}, {transform_indices = @transform_7, window_bounds = array<i64: 16, 128>}]} {
    %c0 = arith.constant 0 : index
    %c0_0 = arith.constant 0 : index
    %0 = vector.load %arg1[%c0, %c0_0] : memref<16x784xf32, #tpu.memory_space<vmem>>, vector<16x784xf32>
    %1 = arith.truncf %0 : vector<16x784xf32> to vector<16x784xbf16>
    %c0_1 = arith.constant 0 : index
    %c0_2 = arith.constant 0 : index
    %2 = vector.load %arg2[%c0_1, %c0_2] : memref<784x512xbf16, #tpu.memory_space<vmem>>, vector<784x512xbf16>
    %cst = arith.constant dense<0.000000e+00> : vector<16x512xf32>
    %3 = tpu.matmul %1, %2, %cst {dimension_numbers = #tpu.dot_dimension_numbers<[1], [0], [0], [1], [0, 0, 1, 1], [], []>} : vector<16x784xbf16>, vector<784x512xbf16>, vector<16x512xf32> -> vector<16x512xf32>
    %c0_3 = arith.constant 0 : index
    %c0_4 = arith.constant 0 : index
    %4 = vector.load %arg3[%c0_3, %c0_4] : memref<1x512xf32, #tpu.memory_space<vmem>>, vector<1x512xf32>
    %5 = vector.broadcast %4 : vector<1x512xf32> to vector<16x512xf32>
    %6 = arith.addf %3, %5 : vector<16x512xf32>
    %cst_5 = arith.constant 0.000000e+00 : f32
    %7 = vector.broadcast %cst_5 : f32 to vector<16x512xf32>
    %8 = arith.maximumf %6, %7 : vector<16x512xf32>
    %9 = arith.truncf %8 : vector<16x512xf32> to vector<16x512xbf16>
    %c0_6 = arith.constant 0 : index
    %c0_7 = arith.constant 0 : index
    %10 = vector.load %arg4[%c0_6, %c0_7] : memref<512x512xbf16, #tpu.memory_space<vmem>>, vector<512x512xbf16>
    %cst_8 = arith.constant dense<0.000000e+00> : vector<16x512xf32>
    %11 = tpu.matmul %9, %10, %cst_8 {dimension_numbers = #tpu.dot_dimension_numbers<[1], [0], [0], [1], [0, 0, 1, 1], [], []>} : vector<16x512xbf16>, vector<512x512xbf16>, vector<16x512xf32> -> vector<16x512xf32>
    %c0_9 = arith.constant 0 : index
    %c0_10 = arith.constant 0 : index
    %12 = vector.load %arg5[%c0_9, %c0_10] : memref<1x512xf32, #tpu.memory_space<vmem>>, vector<1x512xf32>
    %13 = vector.broadcast %12 : vector<1x512xf32> to vector<16x512xf32>
    %14 = arith.addf %11, %13 : vector<16x512xf32>
    %cst_11 = arith.constant 0.000000e+00 : f32
    %15 = vector.broadcast %cst_11 : f32 to vector<16x512xf32>
    %16 = arith.maximumf %14, %15 : vector<16x512xf32>
    %17 = arith.truncf %16 : vector<16x512xf32> to vector<16x512xbf16>
    %c0_12 = arith.constant 0 : index
    %c0_13 = arith.constant 0 : index
    %18 = vector.load %arg6[%c0_12, %c0_13] : memref<512x128xbf16, #tpu.memory_space<vmem>>, vector<512x128xbf16>
    %cst_14 = arith.constant dense<0.000000e+00> : vector<16x128xf32>
    %19 = tpu.matmul %17, %18, %cst_14 {dimension_numbers = #tpu.dot_dimension_numbers<[1], [0], [0], [1], [0, 0, 1, 1], [], []>} : vector<16x512xbf16>, vector<512x128xbf16>, vector<16x128xf32> -> vector<16x128xf32>
    %c0_15 = arith.constant 0 : index
    %c0_16 = arith.constant 0 : index
    %20 = vector.load %arg7[%c0_15, %c0_16] : memref<1x128xf32, #tpu.memory_space<vmem>>, vector<1x128xf32>
    %21 = vector.broadcast %20 : vector<1x128xf32> to vector<16x128xf32>
    %22 = arith.addf %19, %21 : vector<16x128xf32>
    %cst_17 = arith.constant dense<0xFF800000> : vector<16xf32>
    %23 = vector.multi_reduction <maximumf>, %22, %cst_17 [1] : vector<16x128xf32> to vector<16xf32>
    %24 = vector.shape_cast %23 : vector<16xf32> to vector<16x1xf32>
    %25 = vector.broadcast %24 : vector<16x1xf32> to vector<16x128xf32>
    %26 = arith.subf %22, %25 : vector<16x128xf32>
    %27 = math.exp %26 : vector<16x128xf32>
    %cst_18 = arith.constant dense<0.000000e+00> : vector<16xf32>
    %28 = vector.multi_reduction <add>, %27, %cst_18 [1] : vector<16x128xf32> to vector<16xf32>
    %29 = vector.shape_cast %28 : vector<16xf32> to vector<16x1xf32>
    %30 = tpu.reciprocal %29 {approx = true} : vector<16x1xf32> -> vector<16x1xf32>
    %31 = vector.broadcast %30 : vector<16x1xf32> to vector<16x128xf32>
    %32 = arith.mulf %27, %31 : vector<16x128xf32>
    %33 = arith.truncf %32 : vector<16x128xf32> to vector<16x128xbf16>
    %c0_19 = arith.constant 0 : index
    %c0_20 = arith.constant 0 : index
    %34 = vector.load %arg8[%c0_19, %c0_20] : memref<16x128xbf16, #tpu.memory_space<vmem>>, vector<16x128xbf16>
    tpu.vector_store %arg8[%c0_19, %c0_20], %33 {strides = array<i32>} : memref<16x128xbf16, #tpu.memory_space<vmem>>, vector<16x128xbf16>,
    return
  }
  func.func @transform_0(%arg0: i32) -> (i32, i32) {
    %c0_i32 = arith.constant 0 : i32
    %c0_i32_0 = arith.constant 0 : i32
    return %arg0, %c0_i32 : i32, i32
  }
  func.func @transform_1(%arg0: i32) -> (i32, i32) {
    %c0_i32 = arith.constant 0 : i32
    %c0_i32_0 = arith.constant 0 : i32
    %c0_i32_1 = arith.constant 0 : i32
    return %c0_i32, %c0_i32_0 : i32, i32
  }
  func.func @transform_2(%arg0: i32) -> (i32, i32) {
    %c0_i32 = arith.constant 0 : i32
    %c0_i32_0 = arith.constant 0 : i32
    %c0_i32_1 = arith.constant 0 : i32
    return %c0_i32, %c0_i32_0 : i32, i32
  }
  func.func @transform_3(%arg0: i32) -> (i32, i32) {
    %c0_i32 = arith.constant 0 : i32
    %c0_i32_0 = arith.constant 0 : i32
    %c0_i32_1 = arith.constant 0 : i32
    return %c0_i32, %c0_i32_0 : i32, i32
  }
  func.func @transform_4(%arg0: i32) -> (i32, i32) {
    %c0_i32 = arith.constant 0 : i32
    %c0_i32_0 = arith.constant 0 : i32
    %c0_i32_1 = arith.constant 0 : i32
    return %c0_i32, %c0_i32_0 : i32, i32
  }
  func.func @transform_5(%arg0: i32) -> (i32, i32) {
    %c0_i32 = arith.constant 0 : i32
    %c0_i32_0 = arith.constant 0 : i32
    %c0_i32_1 = arith.constant 0 : i32
    return %c0_i32, %c0_i32_0 : i32, i32
  }
  func.func @transform_6(%arg0: i32) -> (i32, i32) {
    %c0_i32 = arith.constant 0 : i32
    %c0_i32_0 = arith.constant 0 : i32
    %c0_i32_1 = arith.constant 0 : i32
    return %c0_i32, %c0_i32_0 : i32, i32
  }
  func.func @transform_7(%arg0: i32) -> (i32, i32) {
    %c0_i32 = arith.constant 0 : i32
    %c0_i32_0 = arith.constant 0 : i32
    return %arg0, %c0_i32 : i32, i32
  }
}

</mosaic_0001>

<llo_original>
// kernel: mnist_net_forward.1
$region0: #{mnist_net_forward.1}
  #allocation0 [shape = 'u32[]', space=smem, size = 0x4, offset = 0x4, fixed_abs, tag = 'smem constant byte address 0x4 - core index']
  #allocation1 [shape = 'u32[72,128]{1,0:T(1,128)}', space=vmem, size = 0x9000, scoped, tag = 'internal scratch']
  %s0 = inlined_call_operand.vmem [shape: f32[48,784], index: 0, kind: input, shape index: {}]
  %s1 = inlined_call_operand.vmem [shape: bf16[784,512], index: 1, kind: input, shape index: {}]
  %s2 = inlined_call_operand.vmem [shape: f32[1,512], index: 2, kind: input, shape index: {}]
  %s3 = inlined_call_operand.hbm [shape: bf16[512,512], index: 3, kind: input, shape index: {}]
  %s4 = inlined_call_operand.vmem [shape: f32[1,512], index: 4, kind: input, shape index: {}]
  %s5 = inlined_call_operand.hbm [shape: bf16[512,128], index: 5, kind: input, shape index: {}]
  %s6 = inlined_call_operand.vmem [shape: f32[1,128], index: 6, kind: input, shape index: {}]
  %s7 = inlined_call_operand.vmem [shape: bf16[48,128], index: 7, kind: output, shape index: {}]
  %s8 = sld [smem:[#allocation0]]
  $region69: #{mnist_net_forward.1} parent=0
    _
  %s10 = ssub.s32 1, %s8
  %s11 = scalar_select 0, %s10, %s8
  $region1: #{mnist_net_forward.1} parent=0
    #allocation2 [shape = 'u8[524288]{0}', space=vmem, size = 0x80000, scoped, tag = 'input window, operand 3, single buffered']
    #allocation3 [shape = 's32[2]{0}', space=sflag, size = 0x8, scoped, tag = 'scoped memory for mnist_net_forward.1']
    #allocation4 [shape = 'u8[131072]{0}', space=vmem, size = 0x20000, scoped, tag = 'input window, operand 5, single buffered']
    #allocation5 [shape = 's32[1]{0}', space=sflag, size = 0x4, scoped, tag = 'scoped memory for mnist_net_forward.1']
    %12 = vsyncpa [#allocation3], 0
    %13 = vsyncpa [#allocation5], 0
    loop: start=0, step=1, limit=5
    $region2: #{mnist_net_forward.1} parent=1 // loop_pre_header
      _
    $region3: #{mnist_net_forward.1} parent=1 // loop_header
      %s15 = sphi 0, %s19
      %p16 = scmp.ge.s32.totalorder %s15, 5
      %s25 = sphi 0, %s27
      %s28 = sphi 0, %s25
      %s29 = sphi 0, %s28
      %s45 = sphi 0, %s29
      %s49 = sphi 0, %s49
      %s51 = sphi 0, %s49
      %s52 = sphi 0, %s51
      %s66 = sphi 0, %s52
      %s70 = sphi 0, %s70
      %s72 = sphi 0, %s70
      %s73 = sphi 0, %s72
      %s87 = sphi 0, %s73
      %s91 = sphi 0, %s91
      %s93 = sphi 0, %s91
      %s94 = sphi 0, %s93
      %s108 = sphi 0, %s94
      %s112 = sphi 0, %s112
      %s114 = sphi 0, %s112
      %s115 = sphi 0, %s114
      %s129 = sphi 0, %s115
      %s133 = sphi 0, %s133
      %s135 = sphi 0, %s133
      %s136 = sphi 0, %s135
      %s150 = sphi 0, %s136
      %s154 = sphi 0, %s154
      %s156 = sphi 0, %s154
      %s157 = sphi 0, %s156
      %s171 = sphi 0, %s157
      %s177 = sphi 0, %s179
      %s180 = sphi 0, %s177
      %s181 = sphi 0, %s180
      %s197 = sphi 0, %s181
    $region4: #{mnist_net_forward.1} parent=1 // loop_header_branch
      %18 = sbr.rel (%p16) target = $region8
    $region5: #{mnist_net_forward.1} parent=1 // loop_body
      %s20 = ssub.s32 %s15, 1
      %s21 = ssub.s32 %s15, 2
      %s22 = sadd.s32 %s15, 1
      %s23 = ssub.s32 %s15, %s22
      %p24 = scmp.eq.s32.totalorder %s23, 0
      %s26 = sadd.s32 %s25, 1
      %s27 = scalar_select %p24, %s25, %s26
      %p30 = pneg %p24
      %p31 = scmp.eq.s32.totalorder %s15, 2
      %p32 = por %p30, %p31
      %p33 = scmp.ne.s32.totalorder %s25, %s28
      %p34 = scmp.eq.s32.totalorder %s15, 0
      %p35 = por %p33, %p34
      %p36 = scmp.ne.s32.totalorder %s25, %s28
      %p37 = scmp.eq.s32.totalorder %s20, 2
      %p38 = por %p36, %p37
      %p39 = scmp.ne.s32.totalorder %s28, %s29
      %p40 = scmp.eq.s32.totalorder %s20, 0
      %p41 = por %p39, %p40
      %p42 = scmp.ne.s32.totalorder %s28, %s29
      %p43 = scmp.eq.s32.totalorder %s21, 2
      %p44 = por %p42, %p43
      %p46 = scmp.ne.s32.totalorder %s29, %s45
      %p47 = scmp.eq.s32.totalorder %s21, 0
      %p48 = por %p46, %p47
      %s50 = sadd.s32 %s49, 1
      %p53 = scmp.eq.s32.totalorder %s15, 2
      %p54 = scmp.ne.s32.totalorder %s49, %s51
      %p55 = scmp.eq.s32.totalorder %s15, 0
      %p56 = por %p54, %p55
      %p57 = scmp.ne.s32.totalorder %s49, %s51
      %p58 = scmp.eq.s32.totalorder %s20, 2
      %p59 = por %p57, %p58
      %p60 = scmp.ne.s32.totalorder %s51, %s52
      %p61 = scmp.eq.s32.totalorder %s20, 0
      %p62 = por %p60, %p61
      %p63 = scmp.ne.s32.totalorder %s51, %s52
      %p64 = scmp.eq.s32.totalorder %s21, 2
      %p65 = por %p63, %p64
      %p67 = scmp.ne.s32.totalorder %s52, %s66
      %p68 = scmp.eq.s32.totalorder %s21, 0
      %p69 = por %p67, %p68
      %s71 = sadd.s32 %s70, 1
      %p74 = scmp.eq.s32.totalorder %s15, 2
      %p75 = scmp.ne.s32.totalorder %s70, %s72
      %p76 = scmp.eq.s32.totalorder %s15, 0
      %p77 = por %p75, %p76
      %p78 = scmp.ne.s32.totalorder %s70, %s72
      %p79 = scmp.eq.s32.totalorder %s20, 2
      %p80 = por %p78, %p79
      %p81 = scmp.ne.s32.totalorder %s72, %s73
      %p82 = scmp.eq.s32.totalorder %s20, 0
      %p83 = por %p81, %p82
      %p84 = scmp.ne.s32.totalorder %s72, %s73
      %p85 = scmp.eq.s32.totalorder %s21, 2
      %p86 = por %p84, %p85
      %p88 = scmp.ne.s32.totalorder %s73, %s87
      %p89 = scmp.eq.s32.totalorder %s21, 0
      %p90 = por %p88, %p89
      %s92 = sadd.s32 %s91, 1
      %p95 = scmp.eq.s32.totalorder %s15, 2
      %p96 = scmp.ne.s32.totalorder %s91, %s93
      %p97 = scmp.eq.s32.totalorder %s15, 0
      %p98 = por %p96, %p97
      %p99 = scmp.ne.s32.totalorder %s91, %s93
      %p100 = scmp.eq.s32.totalorder %s20, 2
      %p101 = por %p99, %p100
      %p102 = scmp.ne.s32.totalorder %s93, %s94
      %p103 = scmp.eq.s32.totalorder %s20, 0
      %p104 = por %p102, %p103
      %p105 = scmp.ne.s32.totalorder %s93, %s94
      %p106 = scmp.eq.s32.totalorder %s21, 2
      %p107 = por %p105, %p106
      %p109 = scmp.ne.s32.totalorder %s94, %s108
      %p110 = scmp.eq.s32.totalorder %s21, 0
      %p111 = por %p109, %p110
      %s113 = sadd.s32 %s112, 1
      %p116 = scmp.eq.s32.totalorder %s15, 2
      %p117 = scmp.ne.s32.totalorder %s112, %s114
      %p118 = scmp.eq.s32.totalorder %s15, 0
      %p119 = por %p117, %p118
      %p120 = scmp.ne.s32.totalorder %s112, %s114
      %p121 = scmp.eq.s32.totalorder %s20, 2
      %p122 = por %p120, %p121
      %p123 = scmp.ne.s32.totalorder %s114, %s115
      %p124 = scmp.eq.s32.totalorder %s20, 0
      %p125 = por %p123, %p124
      %p126 = scmp.ne.s32.totalorder %s114, %s115
      %p127 = scmp.eq.s32.totalorder %s21, 2
      %p128 = por %p126, %p127
      %p130 = scmp.ne.s32.totalorder %s115, %s129
      %p131 = scmp.eq.s32.totalorder %s21, 0
      %p132 = por %p130, %p131
      %s134 = sadd.s32 %s133, 1
      %p137 = scmp.eq.s32.totalorder %s15, 2
      %p138 = scmp.ne.s32.totalorder %s133, %s135
      %p139 = scmp.eq.s32.totalorder %s15, 0
      %p140 = por %p138, %p139
      %p141 = scmp.ne.s32.totalorder %s133, %s135
      %p142 = scmp.eq.s32.totalorder %s20, 2
      %p143 = por %p141, %p142
      %p144 = scmp.ne.s32.totalorder %s135, %s136
      %p145 = scmp.eq.s32.totalorder %s20, 0
      %p146 = por %p144, %p145
      %p147 = scmp.ne.s32.totalorder %s135, %s136
      %p148 = scmp.eq.s32.totalorder %s21, 2
      %p149 = por %p147, %p148
      %p151 = scmp.ne.s32.totalorder %s136, %s150
      %p152 = scmp.eq.s32.totalorder %s21, 0
      %p153 = por %p151, %p152
      %s155 = sadd.s32 %s154, 1
      %p158 = scmp.eq.s32.totalorder %s15, 2
      %p159 = scmp.ne.s32.totalorder %s154, %s156
      %p160 = scmp.eq.s32.totalorder %s15, 0
      %p161 = por %p159, %p160
      %p162 = scmp.ne.s32.totalorder %s154, %s156
      %p163 = scmp.eq.s32.totalorder %s20, 2
      %p164 = por %p162, %p163
      %p165 = scmp.ne.s32.totalorder %s156, %s157
      %p166 = scmp.eq.s32.totalorder %s20, 0
      %p167 = por %p165, %p166
      %p168 = scmp.ne.s32.totalorder %s156, %s157
      %p169 = scmp.eq.s32.totalorder %s21, 2
      %p170 = por %p168, %p169
      %p172 = scmp.ne.s32.totalorder %s157, %s171
      %p173 = scmp.eq.s32.totalorder %s21, 0
      %p174 = por %p172, %p173
      %s175 = ssub.s32 %s15, %s22
      %p176 = scmp.eq.s32.totalorder %s175, 0
      %s178 = sadd.s32 %s177, 1
      %s179 = scalar_select %p176, %s177, %s178
      %p182 = pneg %p176
      %p183 = scmp.eq.s32.totalorder %s15, 2
      %p184 = por %p182, %p183
      %p185 = scmp.ne.s32.totalorder %s177, %s180
      %p186 = scmp.eq.s32.totalorder %s15, 0
      %p187 = por %p185, %p186
      %p188 = scmp.ne.s32.totalorder %s177, %s180
      %p189 = scmp.eq.s32.totalorder %s20, 2
      %p190 = por %p188, %p189
      %p191 = scmp.ne.s32.totalorder %s180, %s181
      %p192 = scmp.eq.s32.totalorder %s20, 0
      %p193 = por %p191, %p192
      %p194 = scmp.ne.s32.totalorder %s180, %s181
      %p195 = scmp.eq.s32.totalorder %s21, 2
      %p196 = por %p194, %p195
      %p198 = scmp.ne.s32.totalorder %s181, %s197
      %p199 = scmp.eq.s32.totalorder %s21, 0
      %p200 = por %p198, %p199
      %p201 = scmp.le.s32.totalorder 1, %s15
      %p202 = scmp.lt.s32.totalorder %s15, 4
      %p203 = pnand %p201, %p202
      %p204 = pneg %p203
      // Predicated region
      $region9: #{mnist_net_forward.1} parent=5 // pred_check
        _
      $region10: #{mnist_net_forward.1} parent=5 // pred_check_branch
        %206 = sbr.rel (%p203) target = $region12
      $region11: #{mnist_net_forward.1} parent=5 // pred_region
        %s207 = ssub.s32 %s15, 1
        // Predicated region
        $region13: #{mnist_net_forward.1} parent=11 // pred_check
          %p208 = pneg %p62
        $region14: #{mnist_net_forward.1} parent=11 // pred_check_branch
          %210 = sbr.rel (%p208) target = $region16
        $region15: #{mnist_net_forward.1} parent=11 // pred_region
          _
        $region16: #{mnist_net_forward.1} parent=11 // pred_fallthru
          _
        // Predicated region
        $region17: #{mnist_net_forward.1} parent=11 // pred_check
          %p211 = pneg %p83
        $region18: #{mnist_net_forward.1} parent=11 // pred_check_branch
          %213 = sbr.rel (%p211) target = $region20
        $region19: #{mnist_net_forward.1} parent=11 // pred_region
          _
        $region20: #{mnist_net_forward.1} parent=11 // pred_fallthru
          _
        // Predicated region
        $region21: #{mnist_net_forward.1} parent=11 // pred_check
          %p214 = pneg %p104
        $region22: #{mnist_net_forward.1} parent=11 // pred_check_branch
          %216 = sbr.rel (%p214) target = $region24
        $region23: #{mnist_net_forward.1} parent=11 // pred_region
          %218 = vsyncadd [#allocation3], 0
          %s219 = sshll.u32 %s3, 4
          %s220 = int_to_ptr.hbm [resolvable:$true] %s219
          %s221 = sshll.u32 [#allocation2], 4
          %s222 = int_to_ptr.vmem [resolvable:$true] %s221
          %227 = dma.hbm_to_vmem [thread:$0]  %s220, 16384, %s222, [#allocation3], 256, 256, 16
        $region24: #{mnist_net_forward.1} parent=11 // pred_fallthru
          _
        // Predicated region
        $region25: #{mnist_net_forward.1} parent=11 // pred_check
          %p228 = pneg %p125
        $region26: #{mnist_net_forward.1} parent=11 // pred_check_branch
          %230 = sbr.rel (%p228) target = $region28
        $region27: #{mnist_net_forward.1} parent=11 // pred_region
          _
        $region28: #{mnist_net_forward.1} parent=11 // pred_fallthru
          _
        // Predicated region
        $region29: #{mnist_net_forward.1} parent=11 // pred_check
          %p231 = pneg %p146
        $region30: #{mnist_net_forward.1} parent=11 // pred_check_branch
          %233 = sbr.rel (%p231) target = $region32
        $region31: #{mnist_net_forward.1} parent=11 // pred_region
          %235 = vsyncadd [#allocation5], 0
          %s236 = sshll.u32 %s5, 4
          %s237 = int_to_ptr.hbm [resolvable:$true] %s236
          %s238 = sshll.u32 [#allocation4], 4
          %s239 = int_to_ptr.vmem [resolvable:$true] %s238
          %244 = dma.hbm_to_vmem [thread:$0]  %s237, 4096, %s239, [#allocation5], 64, 64, 4
        $region32: #{mnist_net_forward.1} parent=11 // pred_fallthru
          _
        // Predicated region
        $region33: #{mnist_net_forward.1} parent=11 // pred_check
          %p245 = pneg %p167
        $region34: #{mnist_net_forward.1} parent=11 // pred_check_branch
          %247 = sbr.rel (%p245) target = $region36
        $region35: #{mnist_net_forward.1} parent=11 // pred_region
          _
        $region36: #{mnist_net_forward.1} parent=11 // pred_fallthru
          _
      $region12: #{mnist_net_forward.1} parent=5 // pred_fallthru
        _
      %p248 = scmp.lt.s32.totalorder %s15, 3
      // Predicated region
      $region37: #{mnist_net_forward.1} parent=5 // pred_check
        %p249 = pneg %p248
      $region38: #{mnist_net_forward.1} parent=5 // pred_check_branch
        %251 = sbr.rel (%p249) target = $region40
      $region39: #{mnist_net_forward.1} parent=5 // pred_region
        // Predicated region
        $region41: #{mnist_net_forward.1} parent=39 // pred_check
          %p252 = pneg %p35
        $region42: #{mnist_net_forward.1} parent=39 // pred_check_branch
          %254 = sbr.rel (%p252) target = $region44
        $region43: #{mnist_net_forward.1} parent=39 // pred_region
          %s255 = smul.u32 2, %s15
          %p256 = scmp.lt.s32.totalorder %s255, 5
          %s257 = scalar_select %p256, %s255, 5
          %s258 = smul.addr %s257, 7
          %s259 = smul.addr %s258, 8
          %s260 = scalar_lea.vmem %s0, %s259
          %s261 = smul.u32 2, %s15
        $region44: #{mnist_net_forward.1} parent=39 // pred_fallthru
          _
      $region40: #{mnist_net_forward.1} parent=5 // pred_fallthru
        _
      %p262 = scmp.le.s32.totalorder 1, %s15
      %p263 = scmp.lt.s32.totalorder %s15, 4
      %p264 = pnand %p262, %p263
      %p265 = pneg %p264
      // Predicated region
      $region45: #{mnist_net_forward.1} parent=5 // pred_check
        _
      $region46: #{mnist_net_forward.1} parent=5 // pred_check_branch
        %267 = sbr.rel (%p264) target = $region48
      $region47: #{mnist_net_forward.1} parent=5 // pred_region
        %s268 = ssub.s32 %s15, 1
        // Predicated region
        $region49: #{mnist_net_forward.1} parent=47 // pred_check
          %p269 = pneg %p104
        $region50: #{mnist_net_forward.1} parent=47 // pred_check_branch
          %271 = sbr.rel (%p269) target = $region52
        $region51: #{mnist_net_forward.1} parent=47 // pred_region
          %273 = dma.done [#allocation3], 16384
        $region52: #{mnist_net_forward.1} parent=47 // pred_fallthru
          _
        // Predicated region
        $region53: #{mnist_net_forward.1} parent=47 // pred_check
          %p274 = pneg %p146
        $region54: #{mnist_net_forward.1} parent=47 // pred_check_branch
          %276 = sbr.rel (%p274) target = $region56
        $region55: #{mnist_net_forward.1} parent=47 // pred_region
          %278 = dma.done [#allocation5], 4096
        $region56: #{mnist_net_forward.1} parent=47 // pred_fallthru
          _
        %s279 = smul.u32 2, %s20
        %p280 = scmp.lt.s32.totalorder %s279, 5
        %s281 = scalar_select %p280, %s279, 5
        %s282 = smul.addr %s281, 7
        %s283 = smul.addr %s282, 8
        %s284 = scalar_lea.vmem %s0, %s283
        %p285 = pneg %p41
        %p286 = pneg %p38
        %p287 = pneg %p62
        %p288 = pneg %p59
        %p289 = pneg %p83
        %p290 = pneg %p80
        %p291 = pneg %p104
        %p292 = pneg %p101
        %p293 = pneg %p125
        %p294 = pneg %p122
        %p295 = pneg %p146
        %p296 = pneg %p143
        %p297 = pneg %p167
        %p298 = pneg %p164
        %p299 = pneg %p193
        %p300 = pneg %p190
        %s301 = smul.u32 2, %s20
        %p302 = scmp.lt.s32.totalorder %s301, 5
        %s303 = scalar_select %p302, %s301, 5
        %s304 = smul.addr %s303, 4
        %s305 = scalar_lea.vmem %s7, %s304
        %s306 = smul.u32 2, %s20
        %p307 = scmp.lt.s32.totalorder %s306, 5
        %s308 = scalar_select %p307, %s306, 5
        %s309 = smul.addr %s308, 7
        %s310 = smul.addr %s309, 8
        %s311 = scalar_lea.vmem %s0, %s310
        %s312 = smul.u32 2, %s20
        %s313 = smul.u32 2, %s20
        %p314 = scmp.lt.s32.totalorder %s313, 5
        %s315 = scalar_select %p314, %s313, 5
        %s316 = smul.addr %s315, 4
        %s317 = scalar_lea.vmem %s7, %s316
        %s318 = smul.u32 2, %s20
        %v320 = vld [vmem:[%s311] sm:$0xff]
        %v321 = vld [vmem:[%s311 + $0x8] sm:$0xff]
        %v322 = vld [vmem:[%s311 + $0x10] sm:$0xff]
        %v323 = vld [vmem:[%s311 + $0x18] sm:$0xff]
        %v324 = vld [vmem:[%s311 + $0x20] sm:$0xff]
        %v325 = vld [vmem:[%s311 + $0x28] sm:$0xff]
        %v326 = vld [vmem:[%s311 + $0x30] sm:$0xff]
        %v327 = vld [vmem:[%s311 + $0x38] sm:$0xff]
        %v328 = vld [vmem:[%s311 + $0x40] sm:$0xff]
        %v329 = vld [vmem:[%s311 + $0x48] sm:$0xff]
        %v330 = vld [vmem:[%s311 + $0x50] sm:$0xff]
        %v331 = vld [vmem:[%s311 + $0x58] sm:$0xff]
        %v332 = vld [vmem:[%s311 + $0x60] sm:$0xff]
        %v333 = vld [vmem:[%s311 + $0x68] sm:$0xff]
        %v334 = vpack.c.bf16 %v327, %v320
        %v335 = vpack.c.bf16 %v328, %v321
        %v336 = vpack.c.bf16 %v329, %v322
        %v337 = vpack.c.bf16 %v330, %v323
        %v338 = vpack.c.bf16 %v331, %v324
        %v339 = vpack.c.bf16 %v332, %v325
        %v340 = vpack.c.bf16 %v333, %v326
        %v341 = vld [vmem:[%s1] sm:$0xff]
        %v342 = vld [vmem:[%s1 + $0x8] sm:$0xff]
        %v343 = vld [vmem:[%s1 + $0x10] sm:$0xff]
        %v344 = vld [vmem:[%s1 + $0x18] sm:$0xff]
        %v345 = vld [vmem:[%s1 + $0x20] sm:$0xff]
        %v346 = vld [vmem:[%s1 + $0x28] sm:$0xff]
        %v347 = vld [vmem:[%s1 + $0x30] sm:$0xff]
        %v348 = vld [vmem:[%s1 + $0x38] sm:$0xff]
        %v349 = vld [vmem:[%s1 + $0x40] sm:$0xff]
        %v350 = vld [vmem:[%s1 + $0x48] sm:$0xff]
        %v351 = vld [vmem:[%s1 + $0x50] sm:$0xff]
        %v352 = vld [vmem:[%s1 + $0x58] sm:$0xff]
        %v353 = vld [vmem:[%s1 + $0x60] sm:$0xff]
        %v354 = vld [vmem:[%s1 + $0x68] sm:$0xff]
        %v355 = vld [vmem:[%s1 + $0x70] sm:$0xff]
        %v356 = vld [vmem:[%s1 + $0x78] sm:$0xff]
        %v357 = vld [vmem:[%s1 + $0x80] sm:$0xff]
        %v358 = vld [vmem:[%s1 + $0x88] sm:$0xff]
        %v359 = vld [vmem:[%s1 + $0x90] sm:$0xff]
        %v360 = vld [vmem:[%s1 + $0x98] sm:$0xff]
        %v361 = vld [vmem:[%s1 + $0xa0] sm:$0xff]
        %v362 = vld [vmem:[%s1 + $0xa8] sm:$0xff]
        %v363 = vld [vmem:[%s1 + $0xb0] sm:$0xff]
        %v364 = vld [vmem:[%s1 + $0xb8] sm:$0xff]
        %v365 = vld [vmem:[%s1 + $0xc0] sm:$0xff]
        %v366 = vld [vmem:[%s1 + $0xc8] sm:$0xff]
        %v367 = vld [vmem:[%s1 + $0xd0] sm:$0xff]
        %v368 = vld [vmem:[%s1 + $0xd8] sm:$0xff]
        %v369 = vld [vmem:[%s1 + $0xe0] sm:$0xff]
        %v370 = vld [vmem:[%s1 + $0xe8] sm:$0xff]
        %v371 = vld [vmem:[%s1 + $0xf0] sm:$0xff]
        %v372 = vld [vmem:[%s1 + $0xf8] sm:$0xff]
        %v373 = vld [vmem:[%s1 + $0x100] sm:$0xff]
        %v374 = vld [vmem:[%s1 + $0x108] sm:$0xff]
        %v375 = vld [vmem:[%s1 + $0x110] sm:$0xff]
        %v376 = vld [vmem:[%s1 + $0x118] sm:$0xff]
        %v377 = vld [vmem:[%s1 + $0x120] sm:$0xff]
        %v378 = vld [vmem:[%s1 + $0x128] sm:$0xff]
        %v379 = vld [vmem:[%s1 + $0x130] sm:$0xff]
        %v380 = vld [vmem:[%s1 + $0x138] sm:$0xff]
        %v381 = vld [vmem:[%s1 + $0x140] sm:$0xff]
        %v382 = vld [vmem:[%s1 + $0x148] sm:$0xff]
        %v383 = vld [vmem:[%s1 + $0x150] sm:$0xff]
        %v384 = vld [vmem:[%s1 + $0x158] sm:$0xff]
        %v385 = vld [vmem:[%s1 + $0x160] sm:$0xff]
        %v386 = vld [vmem:[%s1 + $0x168] sm:$0xff]
        %v387 = vld [vmem:[%s1 + $0x170] sm:$0xff]
        %v388 = vld [vmem:[%s1 + $0x178] sm:$0xff]
        %v389 = vld [vmem:[%s1 + $0x180] sm:$0xff]
        %v390 = vld [vmem:[%s1 + $0x188] sm:$0xff]
        %v391 = vld [vmem:[%s1 + $0x190] sm:$0xff]
        %v392 = vld [vmem:[%s1 + $0x198] sm:$0xff]
        %v393 = vld [vmem:[%s1 + $0x1a0] sm:$0xff]
        %v394 = vld [vmem:[%s1 + $0x1a8] sm:$0xff]
        %v395 = vld [vmem:[%s1 + $0x1b0] sm:$0xff]
        %v396 = vld [vmem:[%s1 + $0x1b8] sm:$0xff]
        %v397 = vld [vmem:[%s1 + $0x1c0] sm:$0xff]
        %v398 = vld [vmem:[%s1 + $0x1c8] sm:$0xff]
        %v399 = vld [vmem:[%s1 + $0x1d0] sm:$0xff]
        %v400 = vld [vmem:[%s1 + $0x1d8] sm:$0xff]
        %v401 = vld [vmem:[%s1 + $0x1e0] sm:$0xff]
        %v402 = vld [vmem:[%s1 + $0x1e8] sm:$0xff]
        %v403 = vld [vmem:[%s1 + $0x1f0] sm:$0xff]
        %v404 = vld [vmem:[%s1 + $0x1f8] sm:$0xff]
        %v405 = vld [vmem:[%s1 + $0x200] sm:$0xff]
        %v406 = vld [vmem:[%s1 + $0x208] sm:$0xff]
        %v407 = vld [vmem:[%s1 + $0x210] sm:$0xff]
        %v408 = vld [vmem:[%s1 + $0x218] sm:$0xff]
        %v409 = vld [vmem:[%s1 + $0x220] sm:$0xff]
        %v410 = vld [vmem:[%s1 + $0x228] sm:$0xff]
        %v411 = vld [vmem:[%s1 + $0x230] sm:$0xff]
        %v412 = vld [vmem:[%s1 + $0x238] sm:$0xff]
        %v413 = vld [vmem:[%s1 + $0x240] sm:$0xff]
        %v414 = vld [vmem:[%s1 + $0x248] sm:$0xff]
        %v415 = vld [vmem:[%s1 + $0x250] sm:$0xff]
        %v416 = vld [vmem:[%s1 + $0x258] sm:$0xff]
        %v417 = vld [vmem:[%s1 + $0x260] sm:$0xff]
        %v418 = vld [vmem:[%s1 + $0x268] sm:$0xff]
        %v419 = vld [vmem:[%s1 + $0x270] sm:$0xff]
        %v420 = vld [vmem:[%s1 + $0x278] sm:$0xff]
        %v421 = vld [vmem:[%s1 + $0x280] sm:$0xff]
        %v422 = vld [vmem:[%s1 + $0x288] sm:$0xff]
        %v423 = vld [vmem:[%s1 + $0x290] sm:$0xff]
        %v424 = vld [vmem:[%s1 + $0x298] sm:$0xff]
        %v425 = vld [vmem:[%s1 + $0x2a0] sm:$0xff]
        %v426 = vld [vmem:[%s1 + $0x2a8] sm:$0xff]
        %v427 = vld [vmem:[%s1 + $0x2b0] sm:$0xff]
        %v428 = vld [vmem:[%s1 + $0x2b8] sm:$0xff]
        %v429 = vld [vmem:[%s1 + $0x2c0] sm:$0xff]
        %v430 = vld [vmem:[%s1 + $0x2c8] sm:$0xff]
        %v431 = vld [vmem:[%s1 + $0x2d0] sm:$0xff]
        %v432 = vld [vmem:[%s1 + $0x2d8] sm:$0xff]
        %v433 = vld [vmem:[%s1 + $0x2e0] sm:$0xff]
        %v434 = vld [vmem:[%s1 + $0x2e8] sm:$0xff]
        %v435 = vld [vmem:[%s1 + $0x2f0] sm:$0xff]
        %v436 = vld [vmem:[%s1 + $0x2f8] sm:$0xff]
        %v437 = vld [vmem:[%s1 + $0x300] sm:$0xff]
        %v438 = vld [vmem:[%s1 + $0x308] sm:$0xff]
        %v439 = vld [vmem:[%s1 + $0x310] sm:$0xff]
        %v440 = vld [vmem:[%s1 + $0x318] sm:$0xff]
        %v441 = vld [vmem:[%s1 + $0x320] sm:$0xff]
        %v442 = vld [vmem:[%s1 + $0x328] sm:$0xff]
        %v443 = vld [vmem:[%s1 + $0x330] sm:$0xff]
        %v444 = vld [vmem:[%s1 + $0x338] sm:$0xff]
        %v445 = vld [vmem:[%s1 + $0x340] sm:$0xff]
        %v446 = vld [vmem:[%s1 + $0x348] sm:$0xff]
        %v447 = vld [vmem:[%s1 + $0x350] sm:$0xff]
        %v448 = vld [vmem:[%s1 + $0x358] sm:$0xff]
        %v449 = vld [vmem:[%s1 + $0x360] sm:$0xff]
        %v450 = vld [vmem:[%s1 + $0x368] sm:$0xff]
        %v451 = vld [vmem:[%s1 + $0x370] sm:$0xff]
        %v452 = vld [vmem:[%s1 + $0x378] sm:$0xff]
        %v453 = vld [vmem:[%s1 + $0x380] sm:$0xff]
        %v454 = vld [vmem:[%s1 + $0x388] sm:$0xff]
        %v455 = vld [vmem:[%s1 + $0x390] sm:$0xff]
        %v456 = vld [vmem:[%s1 + $0x398] sm:$0xff]
        %v457 = vld [vmem:[%s1 + $0x3a0] sm:$0xff]
        %v458 = vld [vmem:[%s1 + $0x3a8] sm:$0xff]
        %v459 = vld [vmem:[%s1 + $0x3b0] sm:$0xff]
        %v460 = vld [vmem:[%s1 + $0x3b8] sm:$0xff]
        %v461 = vld [vmem:[%s1 + $0x3c0] sm:$0xff]
        %v462 = vld [vmem:[%s1 + $0x3c8] sm:$0xff]
        %v463 = vld [vmem:[%s1 + $0x3d0] sm:$0xff]
        %v464 = vld [vmem:[%s1 + $0x3d8] sm:$0xff]
        %v465 = vld [vmem:[%s1 + $0x3e0] sm:$0xff]
        %v466 = vld [vmem:[%s1 + $0x3e8] sm:$0xff]
        %v467 = vld [vmem:[%s1 + $0x3f0] sm:$0xff]
        %v468 = vld [vmem:[%s1 + $0x3f8] sm:$0xff]
        %v469 = vld [vmem:[%s1 + $0x400] sm:$0xff]
        %v470 = vld [vmem:[%s1 + $0x408] sm:$0xff]
        %v471 = vld [vmem:[%s1 + $0x410] sm:$0xff]
        %v472 = vld [vmem:[%s1 + $0x418] sm:$0xff]
        %v473 = vld [vmem:[%s1 + $0x420] sm:$0xff]
        %v474 = vld [vmem:[%s1 + $0x428] sm:$0xff]
        %v475 = vld [vmem:[%s1 + $0x430] sm:$0xff]
        %v476 = vld [vmem:[%s1 + $0x438] sm:$0xff]
        %v477 = vld [vmem:[%s1 + $0x440] sm:$0xff]
        %v478 = vld [vmem:[%s1 + $0x448] sm:$0xff]
        %v479 = vld [vmem:[%s1 + $0x450] sm:$0xff]
        %v480 = vld [vmem:[%s1 + $0x458] sm:$0xff]
        %v481 = vld [vmem:[%s1 + $0x460] sm:$0xff]
        %v482 = vld [vmem:[%s1 + $0x468] sm:$0xff]
        %v483 = vld [vmem:[%s1 + $0x470] sm:$0xff]
        %v484 = vld [vmem:[%s1 + $0x478] sm:$0xff]
        %v485 = vld [vmem:[%s1 + $0x480] sm:$0xff]
        %v486 = vld [vmem:[%s1 + $0x488] sm:$0xff]
        %v487 = vld [vmem:[%s1 + $0x490] sm:$0xff]
        %v488 = vld [vmem:[%s1 + $0x498] sm:$0xff]
        %v489 = vld [vmem:[%s1 + $0x4a0] sm:$0xff]
        %v490 = vld [vmem:[%s1 + $0x4a8] sm:$0xff]
        %v491 = vld [vmem:[%s1 + $0x4b0] sm:$0xff]
        %v492 = vld [vmem:[%s1 + $0x4b8] sm:$0xff]
        %v493 = vld [vmem:[%s1 + $0x4c0] sm:$0xff]
        %v494 = vld [vmem:[%s1 + $0x4c8] sm:$0xff]
        %v495 = vld [vmem:[%s1 + $0x4d0] sm:$0xff]
        %v496 = vld [vmem:[%s1 + $0x4d8] sm:$0xff]
        %v497 = vld [vmem:[%s1 + $0x4e0] sm:$0xff]
        %v498 = vld [vmem:[%s1 + $0x4e8] sm:$0xff]
        %v499 = vld [vmem:[%s1 + $0x4f0] sm:$0xff]
        %v500 = vld [vmem:[%s1 + $0x4f8] sm:$0xff]
        %v501 = vld [vmem:[%s1 + $0x500] sm:$0xff]
        %v502 = vld [vmem:[%s1 + $0x508] sm:$0xff]
        %v503 = vld [vmem:[%s1 + $0x510] sm:$0xff]
        %v504 = vld [vmem:[%s1 + $0x518] sm:$0xff]
        %v505 = vld [vmem:[%s1 + $0x520] sm:$0xff]
        %v506 = vld [vmem:[%s1 + $0x528] sm:$0xff]
        %v507 = vld [vmem:[%s1 + $0x530] sm:$0xff]
        %v508 = vld [vmem:[%s1 + $0x538] sm:$0xff]
        %v509 = vld [vmem:[%s1 + $0x540] sm:$0xff]
        %v510 = vld [vmem:[%s1 + $0x548] sm:$0xff]
        %v511 = vld [vmem:[%s1 + $0x550] sm:$0xff]
        %v512 = vld [vmem:[%s1 + $0x558] sm:$0xff]
        %v513 = vld [vmem:[%s1 + $0x560] sm:$0xff]
        %v514 = vld [vmem:[%s1 + $0x568] sm:$0xff]
        %v515 = vld [vmem:[%s1 + $0x570] sm:$0xff]
        %v516 = vld [vmem:[%s1 + $0x578] sm:$0xff]
        %v517 = vld [vmem:[%s1 + $0x580] sm:$0xff]
        %v518 = vld [vmem:[%s1 + $0x588] sm:$0xff]
        %v519 = vld [vmem:[%s1 + $0x590] sm:$0xff]
        %v520 = vld [vmem:[%s1 + $0x598] sm:$0xff]
        %v521 = vld [vmem:[%s1 + $0x5a0] sm:$0xff]
        %v522 = vld [vmem:[%s1 + $0x5a8] sm:$0xff]
        %v523 = vld [vmem:[%s1 + $0x5b0] sm:$0xff]
        %v524 = vld [vmem:[%s1 + $0x5b8] sm:$0xff]
        %v525 = vld [vmem:[%s1 + $0x5c0] sm:$0xff]
        %v526 = vld [vmem:[%s1 + $0x5c8] sm:$0xff]
        %v527 = vld [vmem:[%s1 + $0x5d0] sm:$0xff]
        %v528 = vld [vmem:[%s1 + $0x5d8] sm:$0xff]
        %v529 = vld [vmem:[%s1 + $0x5e0] sm:$0xff]
        %v530 = vld [vmem:[%s1 + $0x5e8] sm:$0xff]
        %v531 = vld [vmem:[%s1 + $0x5f0] sm:$0xff]
        %v532 = vld [vmem:[%s1 + $0x5f8] sm:$0xff]
        %v533 = vld [vmem:[%s1 + $0x600] sm:$0xff]
        %v534 = vld [vmem:[%s1 + $0x608] sm:$0xff]
        %v535 = vld [vmem:[%s1 + $0x610] sm:$0xff]
        %v536 = vld [vmem:[%s1 + $0x618] sm:$0xff]
        %v537 = vld [vmem:[%s2] sm:$0xf]
        %v539 = vperm.slane %v537, 0
        %v540 = vperm.slane %v537, 1
        %v541 = vperm.slane %v537, 2
        %v542 = vperm.slane %v537, 3
        %v743 = vunpack.c.l.b16 %v341
        %v744 = vunpack.c.h.b16 %v341
        %v745 = vunpack.c.l.b16 %v342
        %v746 = vunpack.c.h.b16 %v342
        %v747 = vunpack.c.l.b16 %v343
        %v748 = vunpack.c.h.b16 %v343
        %v749 = vunpack.c.l.b16 %v344
        %v750 = vunpack.c.h.b16 %v344
        %v751 = vunpack.c.l.b16 %v345
        %v752 = vunpack.c.h.b16 %v345
        %v753 = vunpack.c.l.b16 %v346
        %v754 = vunpack.c.h.b16 %v346
        %v755 = vunpack.c.l.b16 %v347
        %v756 = vunpack.c.h.b16 %v347
        %v757 = vunpack.c.l.b16 %v348
        %v758 = vunpack.c.h.b16 %v348
        %v759 = vunpack.c.l.b16 %v349
        %v760 = vunpack.c.h.b16 %v349
        %v761 = vunpack.c.l.b16 %v350
        %v762 = vunpack.c.h.b16 %v350
        %v763 = vunpack.c.l.b16 %v351
        %v764 = vunpack.c.h.b16 %v351
        %v765 = vunpack.c.l.b16 %v352
        %v766 = vunpack.c.h.b16 %v352
        %v767 = vunpack.c.l.b16 %v353
        %v768 = vunpack.c.h.b16 %v353
        %v769 = vunpack.c.l.b16 %v354
        %v770 = vunpack.c.h.b16 %v354
        %v771 = vunpack.c.l.b16 %v355
        %v772 = vunpack.c.h.b16 %v355
        %v773 = vunpack.c.l.b16 %v356
        %v774 = vunpack.c.h.b16 %v356
        %v775 = vunpack.c.l.b16 %v357
        %v776 = vunpack.c.h.b16 %v357
        %v777 = vunpack.c.l.b16 %v358
        %v778 = vunpack.c.h.b16 %v358
        %v779 = vunpack.c.l.b16 %v359
        %v780 = vunpack.c.h.b16 %v359
        %v781 = vunpack.c.l.b16 %v360
        %v782 = vunpack.c.h.b16 %v360
        %v783 = vunpack.c.l.b16 %v361
        %v784 = vunpack.c.h.b16 %v361
        %v785 = vunpack.c.l.b16 %v362
        %v786 = vunpack.c.h.b16 %v362
        %v787 = vunpack.c.l.b16 %v363
        %v788 = vunpack.c.h.b16 %v363
        %v789 = vunpack.c.l.b16 %v364
        %v790 = vunpack.c.h.b16 %v364
        %v791 = vunpack.c.l.b16 %v365
        %v792 = vunpack.c.h.b16 %v365
        %v793 = vunpack.c.l.b16 %v366
        %v794 = vunpack.c.h.b16 %v366
        %v795 = vunpack.c.l.b16 %v367
        %v796 = vunpack.c.h.b16 %v367
        %v797 = vunpack.c.l.b16 %v368
        %v798 = vunpack.c.h.b16 %v368
        %v799 = vunpack.c.l.b16 %v369
        %v800 = vunpack.c.h.b16 %v369
        %v801 = vunpack.c.l.b16 %v370
        %v802 = vunpack.c.h.b16 %v370
        %v803 = vunpack.c.l.b16 %v371
        %v804 = vunpack.c.h.b16 %v371
        %v805 = vunpack.c.l.b16 %v372
        %v806 = vunpack.c.h.b16 %v372
        %v807 = vunpack.c.l.b16 %v373
        %v808 = vunpack.c.h.b16 %v373
        %v809 = vunpack.c.l.b16 %v374
        %v810 = vunpack.c.h.b16 %v374
        %v811 = vunpack.c.l.b16 %v375
        %v812 = vunpack.c.h.b16 %v375
        %v813 = vunpack.c.l.b16 %v376
        %v814 = vunpack.c.h.b16 %v376
        %v815 = vunpack.c.l.b16 %v377
        %v816 = vunpack.c.h.b16 %v377
        %v817 = vunpack.c.l.b16 %v378
        %v818 = vunpack.c.h.b16 %v378
        %v819 = vunpack.c.l.b16 %v379
        %v820 = vunpack.c.h.b16 %v379
        %v821 = vunpack.c.l.b16 %v380
        %v822 = vunpack.c.h.b16 %v380
        %v823 = vunpack.c.l.b16 %v381
        %v824 = vunpack.c.h.b16 %v381
        %v825 = vunpack.c.l.b16 %v382
        %v826 = vunpack.c.h.b16 %v382
        %v827 = vunpack.c.l.b16 %v383
        %v828 = vunpack.c.h.b16 %v383
        %v829 = vunpack.c.l.b16 %v384
        %v830 = vunpack.c.h.b16 %v384
        %v831 = vunpack.c.l.b16 %v385
        %v832 = vunpack.c.h.b16 %v385
        %v833 = vunpack.c.l.b16 %v386
        %v834 = vunpack.c.h.b16 %v386
        %v835 = vunpack.c.l.b16 %v387
        %v836 = vunpack.c.h.b16 %v387
        %v837 = vunpack.c.l.b16 %v388
        %v838 = vunpack.c.h.b16 %v388
        %v839 = vunpack.c.l.b16 %v389
        %v840 = vunpack.c.h.b16 %v389
        %v841 = vunpack.c.l.b16 %v390
        %v842 = vunpack.c.h.b16 %v390
        %v843 = vunpack.c.l.b16 %v391
        %v844 = vunpack.c.h.b16 %v391
        %v845 = vunpack.c.l.b16 %v392
        %v846 = vunpack.c.h.b16 %v392
        %v847 = vunpack.c.l.b16 %v393
        %v848 = vunpack.c.h.b16 %v393
        %v849 = vunpack.c.l.b16 %v394
        %v850 = vunpack.c.h.b16 %v394
        %v851 = vunpack.c.l.b16 %v395
        %v852 = vunpack.c.h.b16 %v395
        %v853 = vunpack.c.l.b16 %v396
        %v854 = vunpack.c.h.b16 %v396
        %v855 = vunpack.c.l.b16 %v397
        %v856 = vunpack.c.h.b16 %v397
        %v857 = vunpack.c.l.b16 %v398
        %v858 = vunpack.c.h.b16 %v398
        %v859 = vunpack.c.l.b16 %v399
        %v860 = vunpack.c.h.b16 %v399
        %v861 = vunpack.c.l.b16 %v400
        %v862 = vunpack.c.h.b16 %v400
        %v863 = vunpack.c.l.b16 %v401
        %v864 = vunpack.c.h.b16 %v401
        %v865 = vunpack.c.l.b16 %v402
        %v866 = vunpack.c.h.b16 %v402
        %v867 = vunpack.c.l.b16 %v403
        %v868 = vunpack.c.h.b16 %v403
        %v869 = vunpack.c.l.b16 %v404
        %v870 = vunpack.c.h.b16 %v404
        %v871 = vunpack.c.l.b16 %v405
        %v872 = vunpack.c.h.b16 %v405
        %v873 = vunpack.c.l.b16 %v406
        %v874 = vunpack.c.h.b16 %v406
        %v875 = vunpack.c.l.b16 %v407
        %v876 = vunpack.c.h.b16 %v407
        %v877 = vunpack.c.l.b16 %v408
        %v878 = vunpack.c.h.b16 %v408
        %v879 = vunpack.c.l.b16 %v409
        %v880 = vunpack.c.h.b16 %v409
        %v881 = vunpack.c.l.b16 %v410
        %v882 = vunpack.c.h.b16 %v410
        %v883 = vunpack.c.l.b16 %v411
        %v884 = vunpack.c.h.b16 %v411
        %v885 = vunpack.c.l.b16 %v412
        %v886 = vunpack.c.h.b16 %v412
        %v887 = vunpack.c.l.b16 %v413
        %v888 = vunpack.c.h.b16 %v413
        %v889 = vunpack.c.l.b16 %v414
        %v890 = vunpack.c.h.b16 %v414
        %v891 = vunpack.c.l.b16 %v415
        %v892 = vunpack.c.h.b16 %v415
        %v893 = vunpack.c.l.b16 %v416
        %v894 = vunpack.c.h.b16 %v416
        %v895 = vunpack.c.l.b16 %v417
        %v896 = vunpack.c.h.b16 %v417
        %v897 = vunpack.c.l.b16 %v418
        %v898 = vunpack.c.h.b16 %v418
        %v899 = vunpack.c.l.b16 %v419
        %v900 = vunpack.c.h.b16 %v419
        %v901 = vunpack.c.l.b16 %v420
        %v902 = vunpack.c.h.b16 %v420
        %v903 = vunpack.c.l.b16 %v421
        %v904 = vunpack.c.h.b16 %v421
        %v905 = vunpack.c.l.b16 %v422
        %v906 = vunpack.c.h.b16 %v422
        %v907 = vunpack.c.l.b16 %v423
        %v908 = vunpack.c.h.b16 %v423
        %v909 = vunpack.c.l.b16 %v424
        %v910 = vunpack.c.h.b16 %v424
        %v911 = vunpack.c.l.b16 %v425
        %v912 = vunpack.c.h.b16 %v425
        %v913 = vunpack.c.l.b16 %v426
        %v914 = vunpack.c.h.b16 %v426
        %v915 = vunpack.c.l.b16 %v427
        %v916 = vunpack.c.h.b16 %v427
        %v917 = vunpack.c.l.b16 %v428
        %v918 = vunpack.c.h.b16 %v428
        %v919 = vunpack.c.l.b16 %v429
        %v920 = vunpack.c.h.b16 %v429
        %v921 = vunpack.c.l.b16 %v430
        %v922 = vunpack.c.h.b16 %v430
        %v923 = vunpack.c.l.b16 %v431
        %v924 = vunpack.c.h.b16 %v431
        %v925 = vunpack.c.l.b16 %v432
        %v926 = vunpack.c.h.b16 %v432
        %v927 = vunpack.c.l.b16 %v433
        %v928 = vunpack.c.h.b16 %v433
        %v929 = vunpack.c.l.b16 %v434
        %v930 = vunpack.c.h.b16 %v434
        %v931 = vunpack.c.l.b16 %v435
        %v932 = vunpack.c.h.b16 %v435
        %v933 = vunpack.c.l.b16 %v436
        %v934 = vunpack.c.h.b16 %v436
        %v935 = vunpack.c.l.b16 %v437
        %v936 = vunpack.c.h.b16 %v437
        %v937 = vunpack.c.l.b16 %v438
        %v938 = vunpack.c.h.b16 %v438
        %v939 = vunpack.c.l.b16 %v439
        %v940 = vunpack.c.h.b16 %v439
        %v941 = vunpack.c.l.b16 %v440
        %v942 = vunpack.c.h.b16 %v440
        %v943 = vunpack.c.l.b16 %v441
        %v944 = vunpack.c.h.b16 %v441
        %v945 = vunpack.c.l.b16 %v442
        %v946 = vunpack.c.h.b16 %v442
        %v947 = vunpack.c.l.b16 %v443
        %v948 = vunpack.c.h.b16 %v443
        %v949 = vunpack.c.l.b16 %v444
        %v950 = vunpack.c.h.b16 %v444
        %v951 = vunpack.c.l.b16 %v445
        %v952 = vunpack.c.h.b16 %v445
        %v953 = vunpack.c.l.b16 %v446
        %v954 = vunpack.c.h.b16 %v446
        %v955 = vunpack.c.l.b16 %v447
        %v956 = vunpack.c.h.b16 %v447
        %v957 = vunpack.c.l.b16 %v448
        %v958 = vunpack.c.h.b16 %v448
        %v959 = vunpack.c.l.b16 %v449
        %v960 = vunpack.c.h.b16 %v449
        %v961 = vunpack.c.l.b16 %v450
        %v962 = vunpack.c.h.b16 %v450
        %v963 = vunpack.c.l.b16 %v451
        %v964 = vunpack.c.h.b16 %v451
        %v965 = vunpack.c.l.b16 %v452
        %v966 = vunpack.c.h.b16 %v452
        %v967 = vunpack.c.l.b16 %v453
        %v968 = vunpack.c.h.b16 %v453
        %v969 = vunpack.c.l.b16 %v454
        %v970 = vunpack.c.h.b16 %v454
        %v971 = vunpack.c.l.b16 %v455
        %v972 = vunpack.c.h.b16 %v455
        %v973 = vunpack.c.l.b16 %v456
        %v974 = vunpack.c.h.b16 %v456
        %v975 = vunpack.c.l.b16 %v457
        %v976 = vunpack.c.h.b16 %v457
        %v977 = vunpack.c.l.b16 %v458
        %v978 = vunpack.c.h.b16 %v458
        %v979 = vunpack.c.l.b16 %v459
        %v980 = vunpack.c.h.b16 %v459
        %v981 = vunpack.c.l.b16 %v460
        %v982 = vunpack.c.h.b16 %v460
        %v983 = vunpack.c.l.b16 %v461
        %v984 = vunpack.c.h.b16 %v461
        %v985 = vunpack.c.l.b16 %v462
        %v986 = vunpack.c.h.b16 %v462
        %v987 = vunpack.c.l.b16 %v463
        %v988 = vunpack.c.h.b16 %v463
        %v989 = vunpack.c.l.b16 %v464
        %v990 = vunpack.c.h.b16 %v464
        %v991 = vunpack.c.l.b16 %v465
        %v992 = vunpack.c.h.b16 %v465
        %v993 = vunpack.c.l.b16 %v466
        %v994 = vunpack.c.h.b16 %v466
        %v995 = vunpack.c.l.b16 %v467
        %v996 = vunpack.c.h.b16 %v467
        %v997 = vunpack.c.l.b16 %v468
        %v998 = vunpack.c.h.b16 %v468
        %v999 = vunpack.c.l.b16 %v469
        %v1000 = vunpack.c.h.b16 %v469
        %v1001 = vunpack.c.l.b16 %v470
        %v1002 = vunpack.c.h.b16 %v470
        %v1003 = vunpack.c.l.b16 %v471
        %v1004 = vunpack.c.h.b16 %v471
        %v1005 = vunpack.c.l.b16 %v472
        %v1006 = vunpack.c.h.b16 %v472
        %v1007 = vunpack.c.l.b16 %v473
        %v1008 = vunpack.c.h.b16 %v473
        %v1009 = vunpack.c.l.b16 %v474
        %v1010 = vunpack.c.h.b16 %v474
        %v1011 = vunpack.c.l.b16 %v475
        %v1012 = vunpack.c.h.b16 %v475
        %v1013 = vunpack.c.l.b16 %v476
        %v1014 = vunpack.c.h.b16 %v476
        %v1015 = vunpack.c.l.b16 %v477
        %v1016 = vunpack.c.h.b16 %v477
        %v1017 = vunpack.c.l.b16 %v478
        %v1018 = vunpack.c.h.b16 %v478
        %v1019 = vunpack.c.l.b16 %v479
        %v1020 = vunpack.c.h.b16 %v479
        %v1021 = vunpack.c.l.b16 %v480
        %v1022 = vunpack.c.h.b16 %v480
        %v1023 = vunpack.c.l.b16 %v481
        %v1024 = vunpack.c.h.b16 %v481
        %v1025 = vunpack.c.l.b16 %v482
        %v1026 = vunpack.c.h.b16 %v482
        %v1027 = vunpack.c.l.b16 %v483
        %v1028 = vunpack.c.h.b16 %v483
        %v1029 = vunpack.c.l.b16 %v484
        %v1030 = vunpack.c.h.b16 %v484
        %v1031 = vunpack.c.l.b16 %v485
        %v1032 = vunpack.c.h.b16 %v485
        %v1033 = vunpack.c.l.b16 %v486
        %v1034 = vunpack.c.h.b16 %v486
        %v1035 = vunpack.c.l.b16 %v487
        %v1036 = vunpack.c.h.b16 %v487
        %v1037 = vunpack.c.l.b16 %v488
        %v1038 = vunpack.c.h.b16 %v488
        %v1039 = vunpack.c.l.b16 %v489
        %v1040 = vunpack.c.h.b16 %v489
        %v1041 = vunpack.c.l.b16 %v490
        %v1042 = vunpack.c.h.b16 %v490
        %v1043 = vunpack.c.l.b16 %v491
        %v1044 = vunpack.c.h.b16 %v491
        %v1045 = vunpack.c.l.b16 %v492
        %v1046 = vunpack.c.h.b16 %v492
        %v1047 = vunpack.c.l.b16 %v493
        %v1048 = vunpack.c.h.b16 %v493
        %v1049 = vunpack.c.l.b16 %v494
        %v1050 = vunpack.c.h.b16 %v494
        %v1051 = vunpack.c.l.b16 %v495
        %v1052 = vunpack.c.h.b16 %v495
        %v1053 = vunpack.c.l.b16 %v496
        %v1054 = vunpack.c.h.b16 %v496
        %v1055 = vunpack.c.l.b16 %v497
        %v1056 = vunpack.c.h.b16 %v497
        %v1057 = vunpack.c.l.b16 %v498
        %v1058 = vunpack.c.h.b16 %v498
        %v1059 = vunpack.c.l.b16 %v499
        %v1060 = vunpack.c.h.b16 %v499
        %v1061 = vunpack.c.l.b16 %v500
        %v1062 = vunpack.c.h.b16 %v500
        %v1063 = vunpack.c.l.b16 %v501
        %v1064 = vunpack.c.h.b16 %v501
        %v1065 = vunpack.c.l.b16 %v502
        %v1066 = vunpack.c.h.b16 %v502
        %v1067 = vunpack.c.l.b16 %v503
        %v1068 = vunpack.c.h.b16 %v503
        %v1069 = vunpack.c.l.b16 %v504
        %v1070 = vunpack.c.h.b16 %v504
        %v1071 = vunpack.c.l.b16 %v505
        %v1072 = vunpack.c.h.b16 %v505
        %v1073 = vunpack.c.l.b16 %v506
        %v1074 = vunpack.c.h.b16 %v506
        %v1075 = vunpack.c.l.b16 %v507
        %v1076 = vunpack.c.h.b16 %v507
        %v1077 = vunpack.c.l.b16 %v508
        %v1078 = vunpack.c.h.b16 %v508
        %v1079 = vunpack.c.l.b16 %v509
        %v1080 = vunpack.c.h.b16 %v509
        %v1081 = vunpack.c.l.b16 %v510
        %v1082 = vunpack.c.h.b16 %v510
        %v1083 = vunpack.c.l.b16 %v511
        %v1084 = vunpack.c.h.b16 %v511
        %v1085 = vunpack.c.l.b16 %v512
        %v1086 = vunpack.c.h.b16 %v512
        %v1087 = vunpack.c.l.b16 %v513
        %v1088 = vunpack.c.h.b16 %v513
        %v1089 = vunpack.c.l.b16 %v514
        %v1090 = vunpack.c.h.b16 %v514
        %v1091 = vunpack.c.l.b16 %v515
        %v1092 = vunpack.c.h.b16 %v515
        %v1093 = vunpack.c.l.b16 %v516
        %v1094 = vunpack.c.h.b16 %v516
        %v1095 = vunpack.c.l.b16 %v517
        %v1096 = vunpack.c.h.b16 %v517
        %v1097 = vunpack.c.l.b16 %v518
        %v1098 = vunpack.c.h.b16 %v518
        %v1099 = vunpack.c.l.b16 %v519
        %v1100 = vunpack.c.h.b16 %v519
        %v1101 = vunpack.c.l.b16 %v520
        %v1102 = vunpack.c.h.b16 %v520
        %v1103 = vunpack.c.l.b16 %v521
        %v1104 = vunpack.c.h.b16 %v521
        %v1105 = vunpack.c.l.b16 %v522
        %v1106 = vunpack.c.h.b16 %v522
        %v1107 = vunpack.c.l.b16 %v523
        %v1108 = vunpack.c.h.b16 %v523
        %v1109 = vunpack.c.l.b16 %v524
        %v1110 = vunpack.c.h.b16 %v524
        %v1111 = vunpack.c.l.b16 %v525
        %v1112 = vunpack.c.h.b16 %v525
        %v1113 = vunpack.c.l.b16 %v526
        %v1114 = vunpack.c.h.b16 %v526
        %v1115 = vunpack.c.l.b16 %v527
        %v1116 = vunpack.c.h.b16 %v527
        %v1117 = vunpack.c.l.b16 %v528
        %v1118 = vunpack.c.h.b16 %v528
        %v1119 = vunpack.c.l.b16 %v529
        %v1120 = vunpack.c.h.b16 %v529
        %v1121 = vunpack.c.l.b16 %v530
        %v1122 = vunpack.c.h.b16 %v530
        %v1123 = vunpack.c.l.b16 %v531
        %v1124 = vunpack.c.h.b16 %v531
        %v1125 = vunpack.c.l.b16 %v532
        %v1126 = vunpack.c.h.b16 %v532
        %v1127 = vunpack.c.l.b16 %v533
        %v1128 = vunpack.c.h.b16 %v533
        %v1129 = vunpack.c.l.b16 %v534
        %v1130 = vunpack.c.h.b16 %v534
        %v1131 = vunpack.c.l.b16 %v535
        %v1132 = vunpack.c.h.b16 %v535
        %v1133 = vunpack.c.l.b16 %v536
        %v1134 = vunpack.c.h.b16 %v536
        %v1135 = vpack.c.b16 %v747, %v743
        %v1136 = vpack.c.b16 %v748, %v744
        %v1137 = vpack.c.b16 %v749, %v745
        %v1138 = vpack.c.b16 %v750, %v746
        %v1139 = vpack.c.b16 %v755, %v751
        %v1140 = vpack.c.b16 %v756, %v752
        %v1141 = vpack.c.b16 %v757, %v753
        %v1142 = vpack.c.b16 %v758, %v754
        %v1143 = vpack.c.b16 %v763, %v759
        %v1144 = vpack.c.b16 %v764, %v760
        %v1145 = vpack.c.b16 %v765, %v761
        %v1146 = vpack.c.b16 %v766, %v762
        %v1147 = vpack.c.b16 %v771, %v767
        %v1148 = vpack.c.b16 %v772, %v768
        %v1149 = vpack.c.b16 %v773, %v769
        %v1150 = vpack.c.b16 %v774, %v770
        %v1151 = vpack.c.b16 %v779, %v775
        %v1152 = vpack.c.b16 %v780, %v776
        %v1153 = vpack.c.b16 %v781, %v777
        %v1154 = vpack.c.b16 %v782, %v778
        %v1155 = vpack.c.b16 %v787, %v783
        %v1156 = vpack.c.b16 %v788, %v784
        %v1157 = vpack.c.b16 %v789, %v785
        %v1158 = vpack.c.b16 %v790, %v786
        %v1159 = vpack.c.b16 %v795, %v791
        %v1160 = vpack.c.b16 %v796, %v792
        %v1161 = vpack.c.b16 %v797, %v793
        %v1162 = vpack.c.b16 %v798, %v794
        %v1163 = vpack.c.b16 %v803, %v799
        %v1164 = vpack.c.b16 %v804, %v800
        %v1165 = vpack.c.b16 %v805, %v801
        %v1166 = vpack.c.b16 %v806, %v802
        %v1167 = vpack.c.b16 %v811, %v807
        %v1168 = vpack.c.b16 %v812, %v808
        %v1169 = vpack.c.b16 %v813, %v809
        %v1170 = vpack.c.b16 %v814, %v810
        %v1171 = vpack.c.b16 %v819, %v815
        %v1172 = vpack.c.b16 %v820, %v816
        %v1173 = vpack.c.b16 %v821, %v817
        %v1174 = vpack.c.b16 %v822, %v818
        %v1175 = vpack.c.b16 %v827, %v823
        %v1176 = vpack.c.b16 %v828, %v824
        %v1177 = vpack.c.b16 %v829, %v825
        %v1178 = vpack.c.b16 %v830, %v826
        %v1179 = vpack.c.b16 %v835, %v831
        %v1180 = vpack.c.b16 %v836, %v832
        %v1181 = vpack.c.b16 %v837, %v833
        %v1182 = vpack.c.b16 %v838, %v834
        %v1183 = vpack.c.b16 %v843, %v839
        %v1184 = vpack.c.b16 %v844, %v840
        %v1185 = vpack.c.b16 %v845, %v841
        %v1186 = vpack.c.b16 %v846, %v842
        %v1187 = vpack.c.b16 %v851, %v847
        %v1188 = vpack.c.b16 %v852, %v848
        %v1189 = vpack.c.b16 %v853, %v849
        %v1190 = vpack.c.b16 %v854, %v850
        %v1191 = vpack.c.b16 %v859, %v855
        %v1192 = vpack.c.b16 %v860, %v856
        %v1193 = vpack.c.b16 %v861, %v857
        %v1194 = vpack.c.b16 %v862, %v858
        %v1195 = vpack.c.b16 %v867, %v863
        %v1196 = vpack.c.b16 %v868, %v864
        %v1197 = vpack.c.b16 %v869, %v865
        %v1198 = vpack.c.b16 %v870, %v866
        %v1199 = vpack.c.b16 %v875, %v871
        %v1200 = vpack.c.b16 %v876, %v872
        %v1201 = vpack.c.b16 %v877, %v873
        %v1202 = vpack.c.b16 %v878, %v874
        %v1203 = vpack.c.b16 %v883, %v879
        %v1204 = vpack.c.b16 %v884, %v880
        %v1205 = vpack.c.b16 %v885, %v881
        %v1206 = vpack.c.b16 %v886, %v882
        %v1207 = vpack.c.b16 %v891, %v887
        %v1208 = vpack.c.b16 %v892, %v888
        %v1209 = vpack.c.b16 %v893, %v889
        %v1210 = vpack.c.b16 %v894, %v890
        %v1211 = vpack.c.b16 %v899, %v895
        %v1212 = vpack.c.b16 %v900, %v896
        %v1213 = vpack.c.b16 %v901, %v897
        %v1214 = vpack.c.b16 %v902, %v898
        %v1215 = vpack.c.b16 %v907, %v903
        %v1216 = vpack.c.b16 %v908, %v904
        %v1217 = vpack.c.b16 %v909, %v905
        %v1218 = vpack.c.b16 %v910, %v906
        %v1219 = vpack.c.b16 %v915, %v911
        %v1220 = vpack.c.b16 %v916, %v912
        %v1221 = vpack.c.b16 %v917, %v913
        %v1222 = vpack.c.b16 %v918, %v914
        %v1223 = vpack.c.b16 %v923, %v919
        %v1224 = vpack.c.b16 %v924, %v920
        %v1225 = vpack.c.b16 %v925, %v921
        %v1226 = vpack.c.b16 %v926, %v922
        %v1227 = vpack.c.b16 %v931, %v927
        %v1228 = vpack.c.b16 %v932, %v928
        %v1229 = vpack.c.b16 %v933, %v929
        %v1230 = vpack.c.b16 %v934, %v930
        %v1231 = vpack.c.b16 %v939, %v935
        %v1232 = vpack.c.b16 %v940, %v936
        %v1233 = vpack.c.b16 %v941, %v937
        %v1234 = vpack.c.b16 %v942, %v938
        %v1235 = vpack.c.b16 %v947, %v943
        %v1236 = vpack.c.b16 %v948, %v944
        %v1237 = vpack.c.b16 %v949, %v945
        %v1238 = vpack.c.b16 %v950, %v946
        %v1239 = vpack.c.b16 %v955, %v951
        %v1240 = vpack.c.b16 %v956, %v952
        %v1241 = vpack.c.b16 %v957, %v953
        %v1242 = vpack.c.b16 %v958, %v954
        %v1243 = vpack.c.b16 %v963, %v959
        %v1244 = vpack.c.b16 %v964, %v960
        %v1245 = vpack.c.b16 %v965, %v961
        %v1246 = vpack.c.b16 %v966, %v962
        %v1247 = vpack.c.b16 %v971, %v967
        %v1248 = vpack.c.b16 %v972, %v968
        %v1249 = vpack.c.b16 %v973, %v969
        %v1250 = vpack.c.b16 %v974, %v970
        %v1251 = vpack.c.b16 %v979, %v975
        %v1252 = vpack.c.b16 %v980, %v976
        %v1253 = vpack.c.b16 %v981, %v977
        %v1254 = vpack.c.b16 %v982, %v978
        %v1255 = vpack.c.b16 %v987, %v983
        %v1256 = vpack.c.b16 %v988, %v984
        %v1257 = vpack.c.b16 %v989, %v985
        %v1258 = vpack.c.b16 %v990, %v986
        %v1259 = vpack.c.b16 %v995, %v991
        %v1260 = vpack.c.b16 %v996, %v992
        %v1261 = vpack.c.b16 %v997, %v993
        %v1262 = vpack.c.b16 %v998, %v994
        %v1263 = vpack.c.b16 %v1003, %v999
        %v1264 = vpack.c.b16 %v1004, %v1000
        %v1265 = vpack.c.b16 %v1005, %v1001
        %v1266 = vpack.c.b16 %v1006, %v1002
        %v1267 = vpack.c.b16 %v1011, %v1007
        %v1268 = vpack.c.b16 %v1012, %v1008
        %v1269 = vpack.c.b16 %v1013, %v1009
        %v1270 = vpack.c.b16 %v1014, %v1010
        %v1271 = vpack.c.b16 %v1019, %v1015
        %v1272 = vpack.c.b16 %v1020, %v1016
        %v1273 = vpack.c.b16 %v1021, %v1017
        %v1274 = vpack.c.b16 %v1022, %v1018
        %v1275 = vpack.c.b16 %v1027, %v1023
        %v1276 = vpack.c.b16 %v1028, %v1024
        %v1277 = vpack.c.b16 %v1029, %v1025
        %v1278 = vpack.c.b16 %v1030, %v1026
        %v1279 = vpack.c.b16 %v1035, %v1031
        %v1280 = vpack.c.b16 %v1036, %v1032
        %v1281 = vpack.c.b16 %v1037, %v1033
        %v1282 = vpack.c.b16 %v1038, %v1034
        %v1283 = vpack.c.b16 %v1043, %v1039
        %v1284 = vpack.c.b16 %v1044, %v1040
        %v1285 = vpack.c.b16 %v1045, %v1041
        %v1286 = vpack.c.b16 %v1046, %v1042
        %v1287 = vpack.c.b16 %v1051, %v1047
        %v1288 = vpack.c.b16 %v1052, %v1048
        %v1289 = vpack.c.b16 %v1053, %v1049
        %v1290 = vpack.c.b16 %v1054, %v1050
        %v1291 = vpack.c.b16 %v1059, %v1055
        %v1292 = vpack.c.b16 %v1060, %v1056
        %v1293 = vpack.c.b16 %v1061, %v1057
        %v1294 = vpack.c.b16 %v1062, %v1058
        %v1295 = vpack.c.b16 %v1067, %v1063
        %v1296 = vpack.c.b16 %v1068, %v1064
        %v1297 = vpack.c.b16 %v1069, %v1065
        %v1298 = vpack.c.b16 %v1070, %v1066
        %v1299 = vpack.c.b16 %v1075, %v1071
        %v1300 = vpack.c.b16 %v1076, %v1072
        %v1301 = vpack.c.b16 %v1077, %v1073
        %v1302 = vpack.c.b16 %v1078, %v1074
        %v1303 = vpack.c.b16 %v1083, %v1079
        %v1304 = vpack.c.b16 %v1084, %v1080
        %v1305 = vpack.c.b16 %v1085, %v1081
        %v1306 = vpack.c.b16 %v1086, %v1082
        %v1307 = vpack.c.b16 %v1091, %v1087
        %v1308 = vpack.c.b16 %v1092, %v1088
        %v1309 = vpack.c.b16 %v1093, %v1089
        %v1310 = vpack.c.b16 %v1094, %v1090
        %v1311 = vpack.c.b16 %v1099, %v1095
        %v1312 = vpack.c.b16 %v1100, %v1096
        %v1313 = vpack.c.b16 %v1101, %v1097
        %v1314 = vpack.c.b16 %v1102, %v1098
        %v1315 = vpack.c.b16 %v1107, %v1103
        %v1316 = vpack.c.b16 %v1108, %v1104
        %v1317 = vpack.c.b16 %v1109, %v1105
        %v1318 = vpack.c.b16 %v1110, %v1106
        %v1319 = vpack.c.b16 %v1115, %v1111
        %v1320 = vpack.c.b16 %v1116, %v1112
        %v1321 = vpack.c.b16 %v1117, %v1113
        %v1322 = vpack.c.b16 %v1118, %v1114
        %v1323 = vpack.c.b16 %v1123, %v1119
        %v1324 = vpack.c.b16 %v1124, %v1120
        %v1325 = vpack.c.b16 %v1125, %v1121
        %v1326 = vpack.c.b16 %v1126, %v1122
        %v1327 = vpack.c.b16 %v1131, %v1127
        %v1328 = vpack.c.b16 %v1132, %v1128
        %v1329 = vpack.c.b16 %v1133, %v1129
        %v1330 = vpack.c.b16 %v1134, %v1130
        %vm1527 = vcmask 130048
        %v1529 = vsel %vm1527, %v340, 0
        %1531 = vmatpush.bf16.msra.mxu0 %v1163
        %1532 = vmatpush.bf16.msra.mxu0 %v1159
        %1533 = vmatpush.bf16.msra.mxu0 %v1155
        %1534 = vmatpush.bf16.msra.mxu0 %v1151
        %1535 = vmatpush.bf16.msra.mxu0 %v1147
        %1536 = vmatpush.bf16.msra.mxu0 %v1143
        %1537 = vmatpush.bf16.msra.mxu0 %v1139
        %1538 = vmatpush.bf16.msra.mxu0 %v1135
        %1539 = vmatmul.bf16.gmra.mxu0 %v334
        %v1540 = vpop.f32.mrf.mxu0
        %v1541 = vadd.f32 %v539, %v1540
        %v1542 = vpop.f32.mrf.mxu0
        %v1543 = vadd.f32 %v539, %v1542
        %1544 = vdwg.mxu0
        %1545 = vmatpush.bf16.msra.mxu0 %v1195
        %1546 = vmatpush.bf16.msra.mxu0 %v1191
        %1547 = vmatpush.bf16.msra.mxu0 %v1187
        %1548 = vmatpush.bf16.msra.mxu0 %v1183
        %1549 = vmatpush.bf16.msra.mxu0 %v1179
        %1550 = vmatpush.bf16.msra.mxu0 %v1175
        %1551 = vmatpush.bf16.msra.mxu0 %v1171
        %1552 = vmatpush.bf16.msra.mxu0 %v1167
        %1553 = vmatmul.bf16.gmra.mxu0 %v335
        %v1554 = vpop.f32.mrf.mxu0
        %v1555 = vadd.f32 %v1541, %v1554
        %v1556 = vpop.f32.mrf.mxu0
        %v1557 = vadd.f32 %v1543, %v1556
        %1558 = vdwg.mxu0
        %1559 = vmatpush.bf16.msra.mxu0 %v1227
        %1560 = vmatpush.bf16.msra.mxu0 %v1223
        %1561 = vmatpush.bf16.msra.mxu0 %v1219
        %1562 = vmatpush.bf16.msra.mxu0 %v1215
        %1563 = vmatpush.bf16.msra.mxu0 %v1211
        %1564 = vmatpush.bf16.msra.mxu0 %v1207
        %1565 = vmatpush.bf16.msra.mxu0 %v1203
        %1566 = vmatpush.bf16.msra.mxu0 %v1199
        %1567 = vmatmul.bf16.gmra.mxu0 %v336
        %v1568 = vpop.f32.mrf.mxu0
        %v1569 = vadd.f32 %v1555, %v1568
        %v1570 = vpop.f32.mrf.mxu0
        %v1571 = vadd.f32 %v1557, %v1570
        %1572 = vdwg.mxu0
        %1573 = vmatpush.bf16.msra.mxu0 %v1259
        %1574 = vmatpush.bf16.msra.mxu0 %v1255
        %1575 = vmatpush.bf16.msra.mxu0 %v1251
        %1576 = vmatpush.bf16.msra.mxu0 %v1247
        %1577 = vmatpush.bf16.msra.mxu0 %v1243
        %1578 = vmatpush.bf16.msra.mxu0 %v1239
        %1579 = vmatpush.bf16.msra.mxu0 %v1235
        %1580 = vmatpush.bf16.msra.mxu0 %v1231
        %1581 = vmatmul.bf16.gmra.mxu0 %v337
        %v1582 = vpop.f32.mrf.mxu0
        %v1583 = vadd.f32 %v1569, %v1582
        %v1584 = vpop.f32.mrf.mxu0
        %v1585 = vadd.f32 %v1571, %v1584
        %1586 = vdwg.mxu0
        %1587 = vmatpush.bf16.msra.mxu0 %v1291
        %1588 = vmatpush.bf16.msra.mxu0 %v1287
        %1589 = vmatpush.bf16.msra.mxu0 %v1283
        %1590 = vmatpush.bf16.msra.mxu0 %v1279
        %1591 = vmatpush.bf16.msra.mxu0 %v1275
        %1592 = vmatpush.bf16.msra.mxu0 %v1271
        %1593 = vmatpush.bf16.msra.mxu0 %v1267
        %1594 = vmatpush.bf16.msra.mxu0 %v1263
        %1595 = vmatmul.bf16.gmra.mxu0 %v338
        %v1596 = vpop.f32.mrf.mxu0
        %v1597 = vadd.f32 %v1583, %v1596
        %v1598 = vpop.f32.mrf.mxu0
        %v1599 = vadd.f32 %v1585, %v1598
        %1600 = vdwg.mxu0
        %1601 = vmatpush.bf16.msra.mxu0 %v1323
        %1602 = vmatpush.bf16.msra.mxu0 %v1319
        %1603 = vmatpush.bf16.msra.mxu0 %v1315
        %1604 = vmatpush.bf16.msra.mxu0 %v1311
        %1605 = vmatpush.bf16.msra.mxu0 %v1307
        %1606 = vmatpush.bf16.msra.mxu0 %v1303
        %1607 = vmatpush.bf16.msra.mxu0 %v1299
        %1608 = vmatpush.bf16.msra.mxu0 %v1295
        %1609 = vmatmul.bf16.gmra.mxu0 %v339
        %v1610 = vpop.f32.mrf.mxu0
        %v1611 = vadd.f32 %v1597, %v1610
        %v1612 = vpop.f32.mrf.mxu0
        %v1613 = vadd.f32 %v1599, %v1612
        %1614 = vdwg.mxu0
        %1615 = vmatpush.bf16.msra.mxu0 0
        %1616 = vmatpush.bf16.msra.mxu0 0
        %1617 = vmatpush.bf16.msra.mxu0 0
        %1618 = vmatpush.bf16.msra.mxu0 0
        %1619 = vmatpush.bf16.msra.mxu0 0
        %1620 = vmatpush.bf16.msra.mxu0 0
        %1621 = vmatpush.bf16.msra.mxu0 0
        %1622 = vmatpush.bf16.msra.mxu0 %v1327
        %1623 = vmatmul.bf16.gmra.mxu0 %v1529
        %v1624 = vpop.f32.mrf.mxu0
        %v1625 = vadd.f32 %v1611, %v1624
        %v1626 = vpop.f32.mrf.mxu0
        %v1627 = vadd.f32 %v1613, %v1626
        %1628 = vdwg.mxu0
        %1629 = vmatpush.bf16.msra.mxu0 %v1164
        %1630 = vmatpush.bf16.msra.mxu0 %v1160
        %1631 = vmatpush.bf16.msra.mxu0 %v1156
        %1632 = vmatpush.bf16.msra.mxu0 %v1152
        %1633 = vmatpush.bf16.msra.mxu0 %v1148
        %1634 = vmatpush.bf16.msra.mxu0 %v1144
        %1635 = vmatpush.bf16.msra.mxu0 %v1140
        %1636 = vmatpush.bf16.msra.mxu0 %v1136
        %1637 = vmatmul.bf16.gmra.mxu0 %v334
        %v1638 = vpop.f32.mrf.mxu0
        %v1639 = vadd.f32 %v540, %v1638
        %v1640 = vpop.f32.mrf.mxu0
        %v1641 = vadd.f32 %v540, %v1640
        %1642 = vdwg.mxu0
        %1643 = vmatpush.bf16.msra.mxu0 %v1196
        %1644 = vmatpush.bf16.msra.mxu0 %v1192
        %1645 = vmatpush.bf16.msra.mxu0 %v1188
        %1646 = vmatpush.bf16.msra.mxu0 %v1184
        %1647 = vmatpush.bf16.msra.mxu0 %v1180
        %1648 = vmatpush.bf16.msra.mxu0 %v1176
        %1649 = vmatpush.bf16.msra.mxu0 %v1172
        %1650 = vmatpush.bf16.msra.mxu0 %v1168
        %1651 = vmatmul.bf16.gmra.mxu0 %v335
        %v1652 = vpop.f32.mrf.mxu0
        %v1653 = vadd.f32 %v1639, %v1652
        %v1654 = vpop.f32.mrf.mxu0
        %v1655 = vadd.f32 %v1641, %v1654
        %1656 = vdwg.mxu0
        %1657 = vmatpush.bf16.msra.mxu0 %v1228
        %1658 = vmatpush.bf16.msra.mxu0 %v1224
        %1659 = vmatpush.bf16.msra.mxu0 %v1220
        %1660 = vmatpush.bf16.msra.mxu0 %v1216
        %1661 = vmatpush.bf16.msra.mxu0 %v1212
        %1662 = vmatpush.bf16.msra.mxu0 %v1208
        %1663 = vmatpush.bf16.msra.mxu0 %v1204
        %1664 = vmatpush.bf16.msra.mxu0 %v1200
        %1665 = vmatmul.bf16.gmra.mxu0 %v336
        %v1666 = vpop.f32.mrf.mxu0
        %v1667 = vadd.f32 %v1653, %v1666
        %v1668 = vpop.f32.mrf.mxu0
        %v1669 = vadd.f32 %v1655, %v1668
        %1670 = vdwg.mxu0
        %1671 = vmatpush.bf16.msra.mxu0 %v1260
        %1672 = vmatpush.bf16.msra.mxu0 %v1256
        %1673 = vmatpush.bf16.msra.mxu0 %v1252
        %1674 = vmatpush.bf16.msra.mxu0 %v1248
        %1675 = vmatpush.bf16.msra.mxu0 %v1244
        %1676 = vmatpush.bf16.msra.mxu0 %v1240
        %1677 = vmatpush.bf16.msra.mxu0 %v1236
        %1678 = vmatpush.bf16.msra.mxu0 %v1232
        %1679 = vmatmul.bf16.gmra.mxu0 %v337
        %v1680 = vpop.f32.mrf.mxu0
        %v1681 = vadd.f32 %v1667, %v1680
        %v1682 = vpop.f32.mrf.mxu0
        %v1683 = vadd.f32 %v1669, %v1682
        %1684 = vdwg.mxu0
        %1685 = vmatpush.bf16.msra.mxu0 %v1292
        %1686 = vmatpush.bf16.msra.mxu0 %v1288
        %1687 = vmatpush.bf16.msra.mxu0 %v1284
        %1688 = vmatpush.bf16.msra.mxu0 %v1280
        %1689 = vmatpush.bf16.msra.mxu0 %v1276
        %1690 = vmatpush.bf16.msra.mxu0 %v1272
        %1691 = vmatpush.bf16.msra.mxu0 %v1268
        %1692 = vmatpush.bf16.msra.mxu0 %v1264
        %1693 = vmatmul.bf16.gmra.mxu0 %v338
        %v1694 = vpop.f32.mrf.mxu0
        %v1695 = vadd.f32 %v1681, %v1694
        %v1696 = vpop.f32.mrf.mxu0
        %v1697 = vadd.f32 %v1683, %v1696
        %1698 = vdwg.mxu0
        %1699 = vmatpush.bf16.msra.mxu0 %v1324
        %1700 = vmatpush.bf16.msra.mxu0 %v1320
        %1701 = vmatpush.bf16.msra.mxu0 %v1316
        %1702 = vmatpush.bf16.msra.mxu0 %v1312
        %1703 = vmatpush.bf16.msra.mxu0 %v1308
        %1704 = vmatpush.bf16.msra.mxu0 %v1304
        %1705 = vmatpush.bf16.msra.mxu0 %v1300
        %1706 = vmatpush.bf16.msra.mxu0 %v1296
        %1707 = vmatmul.bf16.gmra.mxu0 %v339
        %v1708 = vpop.f32.mrf.mxu0
        %v1709 = vadd.f32 %v1695, %v1708
        %v1710 = vpop.f32.mrf.mxu0
        %v1711 = vadd.f32 %v1697, %v1710
        %1712 = vdwg.mxu0
        %1713 = vmatpush.bf16.msra.mxu0 0
        %1714 = vmatpush.bf16.msra.mxu0 0
        %1715 = vmatpush.bf16.msra.mxu0 0
        %1716 = vmatpush.bf16.msra.mxu0 0
        %1717 = vmatpush.bf16.msra.mxu0 0
        %1718 = vmatpush.bf16.msra.mxu0 0
        %1719 = vmatpush.bf16.msra.mxu0 0
        %1720 = vmatpush.bf16.msra.mxu0 %v1328
        %1721 = vmatmul.bf16.gmra.mxu0 %v1529
        %v1722 = vpop.f32.mrf.mxu0
        %v1723 = vadd.f32 %v1709, %v1722
        %v1724 = vpop.f32.mrf.mxu0
        %v1725 = vadd.f32 %v1711, %v1724
        %1726 = vdwg.mxu0
        %1727 = vmatpush.bf16.msra.mxu0 %v1165
        %1728 = vmatpush.bf16.msra.mxu0 %v1161
        %1729 = vmatpush.bf16.msra.mxu0 %v1157
        %1730 = vmatpush.bf16.msra.mxu0 %v1153
        %1731 = vmatpush.bf16.msra.mxu0 %v1149
        %1732 = vmatpush.bf16.msra.mxu0 %v1145
        %1733 = vmatpush.bf16.msra.mxu0 %v1141
        %1734 = vmatpush.bf16.msra.mxu0 %v1137
        %1735 = vmatmul.bf16.gmra.mxu0 %v334
        %v1736 = vpop.f32.mrf.mxu0
        %v1737 = vadd.f32 %v541, %v1736
        %v1738 = vpop.f32.mrf.mxu0
        %v1739 = vadd.f32 %v541, %v1738
        %1740 = vdwg.mxu0
        %1741 = vmatpush.bf16.msra.mxu0 %v1197
        %1742 = vmatpush.bf16.msra.mxu0 %v1193
        %1743 = vmatpush.bf16.msra.mxu0 %v1189
        %1744 = vmatpush.bf16.msra.mxu0 %v1185
        %1745 = vmatpush.bf16.msra.mxu0 %v1181
        %1746 = vmatpush.bf16.msra.mxu0 %v1177
        %1747 = vmatpush.bf16.msra.mxu0 %v1173
        %1748 = vmatpush.bf16.msra.mxu0 %v1169
        %1749 = vmatmul.bf16.gmra.mxu0 %v335
        %v1750 = vpop.f32.mrf.mxu0
        %v1751 = vadd.f32 %v1737, %v1750
        %v1752 = vpop.f32.mrf.mxu0
        %v1753 = vadd.f32 %v1739, %v1752
        %1754 = vdwg.mxu0
        %1755 = vmatpush.bf16.msra.mxu0 %v1229
        %1756 = vmatpush.bf16.msra.mxu0 %v1225
        %1757 = vmatpush.bf16.msra.mxu0 %v1221
        %1758 = vmatpush.bf16.msra.mxu0 %v1217
        %1759 = vmatpush.bf16.msra.mxu0 %v1213
        %1760 = vmatpush.bf16.msra.mxu0 %v1209
        %1761 = vmatpush.bf16.msra.mxu0 %v1205
        %1762 = vmatpush.bf16.msra.mxu0 %v1201
        %1763 = vmatmul.bf16.gmra.mxu0 %v336
        %v1764 = vpop.f32.mrf.mxu0
        %v1765 = vadd.f32 %v1751, %v1764
        %v1766 = vpop.f32.mrf.mxu0
        %v1767 = vadd.f32 %v1753, %v1766
        %1768 = vdwg.mxu0
        %1769 = vmatpush.bf16.msra.mxu0 %v1261
        %1770 = vmatpush.bf16.msra.mxu0 %v1257
        %1771 = vmatpush.bf16.msra.mxu0 %v1253
        %1772 = vmatpush.bf16.msra.mxu0 %v1249
        %1773 = vmatpush.bf16.msra.mxu0 %v1245
        %1774 = vmatpush.bf16.msra.mxu0 %v1241
        %1775 = vmatpush.bf16.msra.mxu0 %v1237
        %1776 = vmatpush.bf16.msra.mxu0 %v1233
        %1777 = vmatmul.bf16.gmra.mxu0 %v337
        %v1778 = vpop.f32.mrf.mxu0
        %v1779 = vadd.f32 %v1765, %v1778
        %v1780 = vpop.f32.mrf.mxu0
        %v1781 = vadd.f32 %v1767, %v1780
        %1782 = vdwg.mxu0
        %1783 = vmatpush.bf16.msra.mxu0 %v1293
        %1784 = vmatpush.bf16.msra.mxu0 %v1289
        %1785 = vmatpush.bf16.msra.mxu0 %v1285
        %1786 = vmatpush.bf16.msra.mxu0 %v1281
        %1787 = vmatpush.bf16.msra.mxu0 %v1277
        %1788 = vmatpush.bf16.msra.mxu0 %v1273
        %1789 = vmatpush.bf16.msra.mxu0 %v1269
        %1790 = vmatpush.bf16.msra.mxu0 %v1265
        %1791 = vmatmul.bf16.gmra.mxu0 %v338
        %v1792 = vpop.f32.mrf.mxu0
        %v1793 = vadd.f32 %v1779, %v1792
        %v1794 = vpop.f32.mrf.mxu0
        %v1795 = vadd.f32 %v1781, %v1794
        %1796 = vdwg.mxu0
        %1797 = vmatpush.bf16.msra.mxu0 %v1325
        %1798 = vmatpush.bf16.msra.mxu0 %v1321
        %1799 = vmatpush.bf16.msra.mxu0 %v1317
        %1800 = vmatpush.bf16.msra.mxu0 %v1313
        %1801 = vmatpush.bf16.msra.mxu0 %v1309
        %1802 = vmatpush.bf16.msra.mxu0 %v1305
        %1803 = vmatpush.bf16.msra.mxu0 %v1301
        %1804 = vmatpush.bf16.msra.mxu0 %v1297
        %1805 = vmatmul.bf16.gmra.mxu0 %v339
        %v1806 = vpop.f32.mrf.mxu0
        %v1807 = vadd.f32 %v1793, %v1806
        %v1808 = vpop.f32.mrf.mxu0
        %v1809 = vadd.f32 %v1795, %v1808
        %1810 = vdwg.mxu0
        %1811 = vmatpush.bf16.msra.mxu0 0
        %1812 = vmatpush.bf16.msra.mxu0 0
        %1813 = vmatpush.bf16.msra.mxu0 0
        %1814 = vmatpush.bf16.msra.mxu0 0
        %1815 = vmatpush.bf16.msra.mxu0 0
        %1816 = vmatpush.bf16.msra.mxu0 0
        %1817 = vmatpush.bf16.msra.mxu0 0
        %1818 = vmatpush.bf16.msra.mxu0 %v1329
        %1819 = vmatmul.bf16.gmra.mxu0 %v1529
        %v1820 = vpop.f32.mrf.mxu0
        %v1821 = vadd.f32 %v1807, %v1820
        %v1822 = vpop.f32.mrf.mxu0
        %v1823 = vadd.f32 %v1809, %v1822
        %1824 = vdwg.mxu0
        %1825 = vmatpush.bf16.msra.mxu0 %v1166
        %1826 = vmatpush.bf16.msra.mxu0 %v1162
        %1827 = vmatpush.bf16.msra.mxu0 %v1158
        %1828 = vmatpush.bf16.msra.mxu0 %v1154
        %1829 = vmatpush.bf16.msra.mxu0 %v1150
        %1830 = vmatpush.bf16.msra.mxu0 %v1146
        %1831 = vmatpush.bf16.msra.mxu0 %v1142
        %1832 = vmatpush.bf16.msra.mxu0 %v1138
        %1833 = vmatmul.bf16.gmra.mxu0 %v334
        %v1834 = vpop.f32.mrf.mxu0
        %v1835 = vadd.f32 %v542, %v1834
        %v1836 = vpop.f32.mrf.mxu0
        %v1837 = vadd.f32 %v542, %v1836
        %1838 = vdwg.mxu0
        %1839 = vmatpush.bf16.msra.mxu0 %v1198
        %1840 = vmatpush.bf16.msra.mxu0 %v1194
        %1841 = vmatpush.bf16.msra.mxu0 %v1190
        %1842 = vmatpush.bf16.msra.mxu0 %v1186
        %1843 = vmatpush.bf16.msra.mxu0 %v1182
        %1844 = vmatpush.bf16.msra.mxu0 %v1178
        %1845 = vmatpush.bf16.msra.mxu0 %v1174
        %1846 = vmatpush.bf16.msra.mxu0 %v1170
        %1847 = vmatmul.bf16.gmra.mxu0 %v335
        %v1848 = vpop.f32.mrf.mxu0
        %v1849 = vadd.f32 %v1835, %v1848
        %v1850 = vpop.f32.mrf.mxu0
        %v1851 = vadd.f32 %v1837, %v1850
        %1852 = vdwg.mxu0
        %1853 = vmatpush.bf16.msra.mxu0 %v1230
        %1854 = vmatpush.bf16.msra.mxu0 %v1226
        %1855 = vmatpush.bf16.msra.mxu0 %v1222
        %1856 = vmatpush.bf16.msra.mxu0 %v1218
        %1857 = vmatpush.bf16.msra.mxu0 %v1214
        %1858 = vmatpush.bf16.msra.mxu0 %v1210
        %1859 = vmatpush.bf16.msra.mxu0 %v1206
        %1860 = vmatpush.bf16.msra.mxu0 %v1202
        %1861 = vmatmul.bf16.gmra.mxu0 %v336
        %v1862 = vpop.f32.mrf.mxu0
        %v1863 = vadd.f32 %v1849, %v1862
        %v1864 = vpop.f32.mrf.mxu0
        %v1865 = vadd.f32 %v1851, %v1864
        %1866 = vdwg.mxu0
        %1867 = vmatpush.bf16.msra.mxu0 %v1262
        %1868 = vmatpush.bf16.msra.mxu0 %v1258
        %1869 = vmatpush.bf16.msra.mxu0 %v1254
        %1870 = vmatpush.bf16.msra.mxu0 %v1250
        %1871 = vmatpush.bf16.msra.mxu0 %v1246
        %1872 = vmatpush.bf16.msra.mxu0 %v1242
        %1873 = vmatpush.bf16.msra.mxu0 %v1238
        %1874 = vmatpush.bf16.msra.mxu0 %v1234
        %1875 = vmatmul.bf16.gmra.mxu0 %v337
        %v1876 = vpop.f32.mrf.mxu0
        %v1877 = vadd.f32 %v1863, %v1876
        %v1878 = vpop.f32.mrf.mxu0
        %v1879 = vadd.f32 %v1865, %v1878
        %1880 = vdwg.mxu0
        %1881 = vmatpush.bf16.msra.mxu0 %v1294
        %1882 = vmatpush.bf16.msra.mxu0 %v1290
        %1883 = vmatpush.bf16.msra.mxu0 %v1286
        %1884 = vmatpush.bf16.msra.mxu0 %v1282
        %1885 = vmatpush.bf16.msra.mxu0 %v1278
        %1886 = vmatpush.bf16.msra.mxu0 %v1274
        %1887 = vmatpush.bf16.msra.mxu0 %v1270
        %1888 = vmatpush.bf16.msra.mxu0 %v1266
        %1889 = vmatmul.bf16.gmra.mxu0 %v338
        %v1890 = vpop.f32.mrf.mxu0
        %v1891 = vadd.f32 %v1877, %v1890
        %v1892 = vpop.f32.mrf.mxu0
        %v1893 = vadd.f32 %v1879, %v1892
        %1894 = vdwg.mxu0
        %1895 = vmatpush.bf16.msra.mxu0 %v1326
        %1896 = vmatpush.bf16.msra.mxu0 %v1322
        %1897 = vmatpush.bf16.msra.mxu0 %v1318
        %1898 = vmatpush.bf16.msra.mxu0 %v1314
        %1899 = vmatpush.bf16.msra.mxu0 %v1310
        %1900 = vmatpush.bf16.msra.mxu0 %v1306
        %1901 = vmatpush.bf16.msra.mxu0 %v1302
        %1902 = vmatpush.bf16.msra.mxu0 %v1298
        %1903 = vmatmul.bf16.gmra.mxu0 %v339
        %v1904 = vpop.f32.mrf.mxu0
        %v1905 = vadd.f32 %v1891, %v1904
        %v1906 = vpop.f32.mrf.mxu0
        %v1907 = vadd.f32 %v1893, %v1906
        %1908 = vdwg.mxu0
        %1909 = vmatpush.bf16.msra.mxu0 0
        %1910 = vmatpush.bf16.msra.mxu0 0
        %1911 = vmatpush.bf16.msra.mxu0 0
        %1912 = vmatpush.bf16.msra.mxu0 0
        %1913 = vmatpush.bf16.msra.mxu0 0
        %1914 = vmatpush.bf16.msra.mxu0 0
        %1915 = vmatpush.bf16.msra.mxu0 0
        %1916 = vmatpush.bf16.msra.mxu0 %v1330
        %1917 = vmatmul.bf16.gmra.mxu0 %v1529
        %v1918 = vpop.f32.mrf.mxu0
        %v1919 = vadd.f32 %v1905, %v1918
        %v1920 = vpop.f32.mrf.mxu0
        %v1921 = vadd.f32 %v1907, %v1920
        %1922 = vdwg.mxu0
        %v1923 = vmax.f32 %v1625, 0.0
        %v1924 = vmax.f32 %v1723, 0.0
        %v1925 = vmax.f32 %v1821, 0.0
        %v1926 = vmax.f32 %v1919, 0.0
        %v1927 = vmax.f32 %v1627, 0.0
        %v1928 = vmax.f32 %v1725, 0.0
        %v1929 = vmax.f32 %v1823, 0.0
        %v1930 = vmax.f32 %v1921, 0.0
        %v1931 = vpack.c.bf16 %v1927, %v1923
        %v1932 = vpack.c.bf16 %v1928, %v1924
        %v1933 = vpack.c.bf16 %v1929, %v1925
        %v1934 = vpack.c.bf16 %v1930, %v1926
        %v1935 = vld [vmem:[#allocation2] sm:$0xff]
        %v1936 = vld [vmem:[#allocation2 + $0x8] sm:$0xff]
        %v1937 = vld [vmem:[#allocation2 + $0x10] sm:$0xff]
        %v1938 = vld [vmem:[#allocation2 + $0x18] sm:$0xff]
        %v1939 = vld [vmem:[#allocation2 + $0x20] sm:$0xff]
        %v1940 = vld [vmem:[#allocation2 + $0x28] sm:$0xff]
        %v1941 = vld [vmem:[#allocation2 + $0x30] sm:$0xff]
        %v1942 = vld [vmem:[#allocation2 + $0x38] sm:$0xff]
        %v1943 = vld [vmem:[#allocation2 + $0x40] sm:$0xff]
        %v1944 = vld [vmem:[#allocation2 + $0x48] sm:$0xff]
        %v1945 = vld [vmem:[#allocation2 + $0x50] sm:$0xff]
        %v1946 = vld [vmem:[#allocation2 + $0x58] sm:$0xff]
        %v1947 = vld [vmem:[#allocation2 + $0x60] sm:$0xff]
        %v1948 = vld [vmem:[#allocation2 + $0x68] sm:$0xff]
        %v1949 = vld [vmem:[#allocation2 + $0x70] sm:$0xff]
        %v1950 = vld [vmem:[#allocation2 + $0x78] sm:$0xff]
        %v1951 = vld [vmem:[#allocation2 + $0x80] sm:$0xff]
        %v1952 = vld [vmem:[#allocation2 + $0x88] sm:$0xff]
        %v1953 = vld [vmem:[#allocation2 + $0x90] sm:$0xff]
        %v1954 = vld [vmem:[#allocation2 + $0x98] sm:$0xff]
        %v1955 = vld [vmem:[#allocation2 + $0xa0] sm:$0xff]
        %v1956 = vld [vmem:[#allocation2 + $0xa8] sm:$0xff]
        %v1957 = vld [vmem:[#allocation2 + $0xb0] sm:$0xff]
        %v1958 = vld [vmem:[#allocation2 + $0xb8] sm:$0xff]
        %v1959 = vld [vmem:[#allocation2 + $0xc0] sm:$0xff]
        %v1960 = vld [vmem:[#allocation2 + $0xc8] sm:$0xff]
        %v1961 = vld [vmem:[#allocation2 + $0xd0] sm:$0xff]
        %v1962 = vld [vmem:[#allocation2 + $0xd8] sm:$0xff]
        %v1963 = vld [vmem:[#allocation2 + $0xe0] sm:$0xff]
        %v1964 = vld [vmem:[#allocation2 + $0xe8] sm:$0xff]
        %v1965 = vld [vmem:[#allocation2 + $0xf0] sm:$0xff]
        %v1966 = vld [vmem:[#allocation2 + $0xf8] sm:$0xff]
        %v1967 = vld [vmem:[#allocation2 + $0x100] sm:$0xff]
        %v1968 = vld [vmem:[#allocation2 + $0x108] sm:$0xff]
        %v1969 = vld [vmem:[#allocation2 + $0x110] sm:$0xff]
        %v1970 = vld [vmem:[#allocation2 + $0x118] sm:$0xff]
        %v1971 = vld [vmem:[#allocation2 + $0x120] sm:$0xff]
        %v1972 = vld [vmem:[#allocation2 + $0x128] sm:$0xff]
        %v1973 = vld [vmem:[#allocation2 + $0x130] sm:$0xff]
        %v1974 = vld [vmem:[#allocation2 + $0x138] sm:$0xff]
        %v1975 = vld [vmem:[#allocation2 + $0x140] sm:$0xff]
        %v1976 = vld [vmem:[#allocation2 + $0x148] sm:$0xff]
        %v1977 = vld [vmem:[#allocation2 + $0x150] sm:$0xff]
        %v1978 = vld [vmem:[#allocation2 + $0x158] sm:$0xff]
        %v1979 = vld [vmem:[#allocation2 + $0x160] sm:$0xff]
        %v1980 = vld [vmem:[#allocation2 + $0x168] sm:$0xff]
        %v1981 = vld [vmem:[#allocation2 + $0x170] sm:$0xff]
        %v1982 = vld [vmem:[#allocation2 + $0x178] sm:$0xff]
        %v1983 = vld [vmem:[#allocation2 + $0x180] sm:$0xff]
        %v1984 = vld [vmem:[#allocation2 + $0x188] sm:$0xff]
        %v1985 = vld [vmem:[#allocation2 + $0x190] sm:$0xff]
        %v1986 = vld [vmem:[#allocation2 + $0x198] sm:$0xff]
        %v1987 = vld [vmem:[#allocation2 + $0x1a0] sm:$0xff]
        %v1988 = vld [vmem:[#allocation2 + $0x1a8] sm:$0xff]
        %v1989 = vld [vmem:[#allocation2 + $0x1b0] sm:$0xff]
        %v1990 = vld [vmem:[#allocation2 + $0x1b8] sm:$0xff]
        %v1991 = vld [vmem:[#allocation2 + $0x1c0] sm:$0xff]
        %v1992 = vld [vmem:[#allocation2 + $0x1c8] sm:$0xff]
        %v1993 = vld [vmem:[#allocation2 + $0x1d0] sm:$0xff]
        %v1994 = vld [vmem:[#allocation2 + $0x1d8] sm:$0xff]
        %v1995 = vld [vmem:[#allocation2 + $0x1e0] sm:$0xff]
        %v1996 = vld [vmem:[#allocation2 + $0x1e8] sm:$0xff]
        %v1997 = vld [vmem:[#allocation2 + $0x1f0] sm:$0xff]
        %v1998 = vld [vmem:[#allocation2 + $0x1f8] sm:$0xff]
        %v1999 = vld [vmem:[#allocation2 + $0x200] sm:$0xff]
        %v2000 = vld [vmem:[#allocation2 + $0x208] sm:$0xff]
        %v2001 = vld [vmem:[#allocation2 + $0x210] sm:$0xff]
        %v2002 = vld [vmem:[#allocation2 + $0x218] sm:$0xff]
        %v2003 = vld [vmem:[#allocation2 + $0x220] sm:$0xff]
        %v2004 = vld [vmem:[#allocation2 + $0x228] sm:$0xff]
        %v2005 = vld [vmem:[#allocation2 + $0x230] sm:$0xff]
        %v2006 = vld [vmem:[#allocation2 + $0x238] sm:$0xff]
        %v2007 = vld [vmem:[#allocation2 + $0x240] sm:$0xff]
        %v2008 = vld [vmem:[#allocation2 + $0x248] sm:$0xff]
        %v2009 = vld [vmem:[#allocation2 + $0x250] sm:$0xff]
        %v2010 = vld [vmem:[#allocation2 + $0x258] sm:$0xff]
        %v2011 = vld [vmem:[#allocation2 + $0x260] sm:$0xff]
        %v2012 = vld [vmem:[#allocation2 + $0x268] sm:$0xff]
        %v2013 = vld [vmem:[#allocation2 + $0x270] sm:$0xff]
        %v2014 = vld [vmem:[#allocation2 + $0x278] sm:$0xff]
        %v2015 = vld [vmem:[#allocation2 + $0x280] sm:$0xff]
        %v2016 = vld [vmem:[#allocation2 + $0x288] sm:$0xff]
        %v2017 = vld [vmem:[#allocation2 + $0x290] sm:$0xff]
        %v2018 = vld [vmem:[#allocation2 + $0x298] sm:$0xff]
        %v2019 = vld [vmem:[#allocation2 + $0x2a0] sm:$0xff]
        %v2020 = vld [vmem:[#allocation2 + $0x2a8] sm:$0xff]
        %v2021 = vld [vmem:[#allocation2 + $0x2b0] sm:$0xff]
        %v2022 = vld [vmem:[#allocation2 + $0x2b8] sm:$0xff]
        %v2023 = vld [vmem:[#allocation2 + $0x2c0] sm:$0xff]
        %v2024 = vld [vmem:[#allocation2 + $0x2c8] sm:$0xff]
        %v2025 = vld [vmem:[#allocation2 + $0x2d0] sm:$0xff]
        %v2026 = vld [vmem:[#allocation2 + $0x2d8] sm:$0xff]
        %v2027 = vld [vmem:[#allocation2 + $0x2e0] sm:$0xff]
        %v2028 = vld [vmem:[#allocation2 + $0x2e8] sm:$0xff]
        %v2029 = vld [vmem:[#allocation2 + $0x2f0] sm:$0xff]
        %v2030 = vld [vmem:[#allocation2 + $0x2f8] sm:$0xff]
        %v2031 = vld [vmem:[#allocation2 + $0x300] sm:$0xff]
        %v2032 = vld [vmem:[#allocation2 + $0x308] sm:$0xff]
        %v2033 = vld [vmem:[#allocation2 + $0x310] sm:$0xff]
        %v2034 = vld [vmem:[#allocation2 + $0x318] sm:$0xff]
        %v2035 = vld [vmem:[#allocation2 + $0x320] sm:$0xff]
        %v2036 = vld [vmem:[#allocation2 + $0x328] sm:$0xff]
        %v2037 = vld [vmem:[#allocation2 + $0x330] sm:$0xff]
        %v2038 = vld [vmem:[#allocation2 + $0x338] sm:$0xff]
        %v2039 = vld [vmem:[#allocation2 + $0x340] sm:$0xff]
        %v2040 = vld [vmem:[#allocation2 + $0x348] sm:$0xff]
        %v2041 = vld [vmem:[#allocation2 + $0x350] sm:$0xff]
        %v2042 = vld [vmem:[#allocation2 + $0x358] sm:$0xff]
        %v2043 = vld [vmem:[#allocation2 + $0x360] sm:$0xff]
        %v2044 = vld [vmem:[#allocation2 + $0x368] sm:$0xff]
        %v2045 = vld [vmem:[#allocation2 + $0x370] sm:$0xff]
        %v2046 = vld [vmem:[#allocation2 + $0x378] sm:$0xff]
        %v2047 = vld [vmem:[#allocation2 + $0x380] sm:$0xff]
        %v2048 = vld [vmem:[#allocation2 + $0x388] sm:$0xff]
        %v2049 = vld [vmem:[#allocation2 + $0x390] sm:$0xff]
        %v2050 = vld [vmem:[#allocation2 + $0x398] sm:$0xff]
        %v2051 = vld [vmem:[#allocation2 + $0x3a0] sm:$0xff]
        %v2052 = vld [vmem:[#allocation2 + $0x3a8] sm:$0xff]
        %v2053 = vld [vmem:[#allocation2 + $0x3b0] sm:$0xff]
        %v2054 = vld [vmem:[#allocation2 + $0x3b8] sm:$0xff]
        %v2055 = vld [vmem:[#allocation2 + $0x3c0] sm:$0xff]
        %v2056 = vld [vmem:[#allocation2 + $0x3c8] sm:$0xff]
        %v2057 = vld [vmem:[#allocation2 + $0x3d0] sm:$0xff]
        %v2058 = vld [vmem:[#allocation2 + $0x3d8] sm:$0xff]
        %v2059 = vld [vmem:[#allocation2 + $0x3e0] sm:$0xff]
        %v2060 = vld [vmem:[#allocation2 + $0x3e8] sm:$0xff]
        %v2061 = vld [vmem:[#allocation2 + $0x3f0] sm:$0xff]
        %v2062 = vld [vmem:[#allocation2 + $0x3f8] sm:$0xff]
        %v2063 = vld [vmem:[%s4] sm:$0xf]
        %v2065 = vperm.slane %v2063, 0
        %v2066 = vperm.slane %v2063, 1
        %v2067 = vperm.slane %v2063, 2
        %v2068 = vperm.slane %v2063, 3
        %v2201 = vunpack.c.l.b16 %v1935
        %v2202 = vunpack.c.h.b16 %v1935
        %v2203 = vunpack.c.l.b16 %v1936
        %v2204 = vunpack.c.h.b16 %v1936
        %v2205 = vunpack.c.l.b16 %v1937
        %v2206 = vunpack.c.h.b16 %v1937
        %v2207 = vunpack.c.l.b16 %v1938
        %v2208 = vunpack.c.h.b16 %v1938
        %v2209 = vunpack.c.l.b16 %v1939
        %v2210 = vunpack.c.h.b16 %v1939
        %v2211 = vunpack.c.l.b16 %v1940
        %v2212 = vunpack.c.h.b16 %v1940
        %v2213 = vunpack.c.l.b16 %v1941
        %v2214 = vunpack.c.h.b16 %v1941
        %v2215 = vunpack.c.l.b16 %v1942
        %v2216 = vunpack.c.h.b16 %v1942
        %v2217 = vunpack.c.l.b16 %v1943
        %v2218 = vunpack.c.h.b16 %v1943
        %v2219 = vunpack.c.l.b16 %v1944
        %v2220 = vunpack.c.h.b16 %v1944
        %v2221 = vunpack.c.l.b16 %v1945
        %v2222 = vunpack.c.h.b16 %v1945
        %v2223 = vunpack.c.l.b16 %v1946
        %v2224 = vunpack.c.h.b16 %v1946
        %v2225 = vunpack.c.l.b16 %v1947
        %v2226 = vunpack.c.h.b16 %v1947
        %v2227 = vunpack.c.l.b16 %v1948
        %v2228 = vunpack.c.h.b16 %v1948
        %v2229 = vunpack.c.l.b16 %v1949
        %v2230 = vunpack.c.h.b16 %v1949
        %v2231 = vunpack.c.l.b16 %v1950
        %v2232 = vunpack.c.h.b16 %v1950
        %v2233 = vunpack.c.l.b16 %v1951
        %v2234 = vunpack.c.h.b16 %v1951
        %v2235 = vunpack.c.l.b16 %v1952
        %v2236 = vunpack.c.h.b16 %v1952
        %v2237 = vunpack.c.l.b16 %v1953
        %v2238 = vunpack.c.h.b16 %v1953
        %v2239 = vunpack.c.l.b16 %v1954
        %v2240 = vunpack.c.h.b16 %v1954
        %v2241 = vunpack.c.l.b16 %v1955
        %v2242 = vunpack.c.h.b16 %v1955
        %v2243 = vunpack.c.l.b16 %v1956
        %v2244 = vunpack.c.h.b16 %v1956
        %v2245 = vunpack.c.l.b16 %v1957
        %v2246 = vunpack.c.h.b16 %v1957
        %v2247 = vunpack.c.l.b16 %v1958
        %v2248 = vunpack.c.h.b16 %v1958
        %v2249 = vunpack.c.l.b16 %v1959
        %v2250 = vunpack.c.h.b16 %v1959
        %v2251 = vunpack.c.l.b16 %v1960
        %v2252 = vunpack.c.h.b16 %v1960
        %v2253 = vunpack.c.l.b16 %v1961
        %v2254 = vunpack.c.h.b16 %v1961
        %v2255 = vunpack.c.l.b16 %v1962
        %v2256 = vunpack.c.h.b16 %v1962
        %v2257 = vunpack.c.l.b16 %v1963
        %v2258 = vunpack.c.h.b16 %v1963
        %v2259 = vunpack.c.l.b16 %v1964
        %v2260 = vunpack.c.h.b16 %v1964
        %v2261 = vunpack.c.l.b16 %v1965
        %v2262 = vunpack.c.h.b16 %v1965
        %v2263 = vunpack.c.l.b16 %v1966
        %v2264 = vunpack.c.h.b16 %v1966
        %v2265 = vunpack.c.l.b16 %v1967
        %v2266 = vunpack.c.h.b16 %v1967
        %v2267 = vunpack.c.l.b16 %v1968
        %v2268 = vunpack.c.h.b16 %v1968
        %v2269 = vunpack.c.l.b16 %v1969
        %v2270 = vunpack.c.h.b16 %v1969
        %v2271 = vunpack.c.l.b16 %v1970
        %v2272 = vunpack.c.h.b16 %v1970
        %v2273 = vunpack.c.l.b16 %v1971
        %v2274 = vunpack.c.h.b16 %v1971
        %v2275 = vunpack.c.l.b16 %v1972
        %v2276 = vunpack.c.h.b16 %v1972
        %v2277 = vunpack.c.l.b16 %v1973
        %v2278 = vunpack.c.h.b16 %v1973
        %v2279 = vunpack.c.l.b16 %v1974
        %v2280 = vunpack.c.h.b16 %v1974
        %v2281 = vunpack.c.l.b16 %v1975
        %v2282 = vunpack.c.h.b16 %v1975
        %v2283 = vunpack.c.l.b16 %v1976
        %v2284 = vunpack.c.h.b16 %v1976
        %v2285 = vunpack.c.l.b16 %v1977
        %v2286 = vunpack.c.h.b16 %v1977
        %v2287 = vunpack.c.l.b16 %v1978
        %v2288 = vunpack.c.h.b16 %v1978
        %v2289 = vunpack.c.l.b16 %v1979
        %v2290 = vunpack.c.h.b16 %v1979
        %v2291 = vunpack.c.l.b16 %v1980
        %v2292 = vunpack.c.h.b16 %v1980
        %v2293 = vunpack.c.l.b16 %v1981
        %v2294 = vunpack.c.h.b16 %v1981
        %v2295 = vunpack.c.l.b16 %v1982
        %v2296 = vunpack.c.h.b16 %v1982
        %v2297 = vunpack.c.l.b16 %v1983
        %v2298 = vunpack.c.h.b16 %v1983
        %v2299 = vunpack.c.l.b16 %v1984
        %v2300 = vunpack.c.h.b16 %v1984
        %v2301 = vunpack.c.l.b16 %v1985
        %v2302 = vunpack.c.h.b16 %v1985
        %v2303 = vunpack.c.l.b16 %v1986
        %v2304 = vunpack.c.h.b16 %v1986
        %v2305 = vunpack.c.l.b16 %v1987
        %v2306 = vunpack.c.h.b16 %v1987
        %v2307 = vunpack.c.l.b16 %v1988
        %v2308 = vunpack.c.h.b16 %v1988
        %v2309 = vunpack.c.l.b16 %v1989
        %v2310 = vunpack.c.h.b16 %v1989
        %v2311 = vunpack.c.l.b16 %v1990
        %v2312 = vunpack.c.h.b16 %v1990
        %v2313 = vunpack.c.l.b16 %v1991
        %v2314 = vunpack.c.h.b16 %v1991
        %v2315 = vunpack.c.l.b16 %v1992
        %v2316 = vunpack.c.h.b16 %v1992
        %v2317 = vunpack.c.l.b16 %v1993
        %v2318 = vunpack.c.h.b16 %v1993
        %v2319 = vunpack.c.l.b16 %v1994
        %v2320 = vunpack.c.h.b16 %v1994
        %v2321 = vunpack.c.l.b16 %v1995
        %v2322 = vunpack.c.h.b16 %v1995
        %v2323 = vunpack.c.l.b16 %v1996
        %v2324 = vunpack.c.h.b16 %v1996
        %v2325 = vunpack.c.l.b16 %v1997
        %v2326 = vunpack.c.h.b16 %v1997
        %v2327 = vunpack.c.l.b16 %v1998
        %v2328 = vunpack.c.h.b16 %v1998
        %v2329 = vunpack.c.l.b16 %v1999
        %v2330 = vunpack.c.h.b16 %v1999
        %v2331 = vunpack.c.l.b16 %v2000
        %v2332 = vunpack.c.h.b16 %v2000
        %v2333 = vunpack.c.l.b16 %v2001
        %v2334 = vunpack.c.h.b16 %v2001
        %v2335 = vunpack.c.l.b16 %v2002
        %v2336 = vunpack.c.h.b16 %v2002
        %v2337 = vunpack.c.l.b16 %v2003
        %v2338 = vunpack.c.h.b16 %v2003
        %v2339 = vunpack.c.l.b16 %v2004
        %v2340 = vunpack.c.h.b16 %v2004
        %v2341 = vunpack.c.l.b16 %v2005
        %v2342 = vunpack.c.h.b16 %v2005
        %v2343 = vunpack.c.l.b16 %v2006
        %v2344 = vunpack.c.h.b16 %v2006
        %v2345 = vunpack.c.l.b16 %v2007
        %v2346 = vunpack.c.h.b16 %v2007
        %v2347 = vunpack.c.l.b16 %v2008
        %v2348 = vunpack.c.h.b16 %v2008
        %v2349 = vunpack.c.l.b16 %v2009
        %v2350 = vunpack.c.h.b16 %v2009
        %v2351 = vunpack.c.l.b16 %v2010
        %v2352 = vunpack.c.h.b16 %v2010
        %v2353 = vunpack.c.l.b16 %v2011
        %v2354 = vunpack.c.h.b16 %v2011
        %v2355 = vunpack.c.l.b16 %v2012
        %v2356 = vunpack.c.h.b16 %v2012
        %v2357 = vunpack.c.l.b16 %v2013
        %v2358 = vunpack.c.h.b16 %v2013
        %v2359 = vunpack.c.l.b16 %v2014
        %v2360 = vunpack.c.h.b16 %v2014
        %v2361 = vunpack.c.l.b16 %v2015
        %v2362 = vunpack.c.h.b16 %v2015
        %v2363 = vunpack.c.l.b16 %v2016
        %v2364 = vunpack.c.h.b16 %v2016
        %v2365 = vunpack.c.l.b16 %v2017
        %v2366 = vunpack.c.h.b16 %v2017
        %v2367 = vunpack.c.l.b16 %v2018
        %v2368 = vunpack.c.h.b16 %v2018
        %v2369 = vunpack.c.l.b16 %v2019
        %v2370 = vunpack.c.h.b16 %v2019
        %v2371 = vunpack.c.l.b16 %v2020
        %v2372 = vunpack.c.h.b16 %v2020
        %v2373 = vunpack.c.l.b16 %v2021
        %v2374 = vunpack.c.h.b16 %v2021
        %v2375 = vunpack.c.l.b16 %v2022
        %v2376 = vunpack.c.h.b16 %v2022
        %v2377 = vunpack.c.l.b16 %v2023
        %v2378 = vunpack.c.h.b16 %v2023
        %v2379 = vunpack.c.l.b16 %v2024
        %v2380 = vunpack.c.h.b16 %v2024
        %v2381 = vunpack.c.l.b16 %v2025
        %v2382 = vunpack.c.h.b16 %v2025
        %v2383 = vunpack.c.l.b16 %v2026
        %v2384 = vunpack.c.h.b16 %v2026
        %v2385 = vunpack.c.l.b16 %v2027
        %v2386 = vunpack.c.h.b16 %v2027
        %v2387 = vunpack.c.l.b16 %v2028
        %v2388 = vunpack.c.h.b16 %v2028
        %v2389 = vunpack.c.l.b16 %v2029
        %v2390 = vunpack.c.h.b16 %v2029
        %v2391 = vunpack.c.l.b16 %v2030
        %v2392 = vunpack.c.h.b16 %v2030
        %v2393 = vunpack.c.l.b16 %v2031
        %v2394 = vunpack.c.h.b16 %v2031
        %v2395 = vunpack.c.l.b16 %v2032
        %v2396 = vunpack.c.h.b16 %v2032
        %v2397 = vunpack.c.l.b16 %v2033
        %v2398 = vunpack.c.h.b16 %v2033
        %v2399 = vunpack.c.l.b16 %v2034
        %v2400 = vunpack.c.h.b16 %v2034
        %v2401 = vunpack.c.l.b16 %v2035
        %v2402 = vunpack.c.h.b16 %v2035
        %v2403 = vunpack.c.l.b16 %v2036
        %v2404 = vunpack.c.h.b16 %v2036
        %v2405 = vunpack.c.l.b16 %v2037
        %v2406 = vunpack.c.h.b16 %v2037
        %v2407 = vunpack.c.l.b16 %v2038
        %v2408 = vunpack.c.h.b16 %v2038
        %v2409 = vunpack.c.l.b16 %v2039
        %v2410 = vunpack.c.h.b16 %v2039
        %v2411 = vunpack.c.l.b16 %v2040
        %v2412 = vunpack.c.h.b16 %v2040
        %v2413 = vunpack.c.l.b16 %v2041
        %v2414 = vunpack.c.h.b16 %v2041
        %v2415 = vunpack.c.l.b16 %v2042
        %v2416 = vunpack.c.h.b16 %v2042
        %v2417 = vunpack.c.l.b16 %v2043
        %v2418 = vunpack.c.h.b16 %v2043
        %v2419 = vunpack.c.l.b16 %v2044
        %v2420 = vunpack.c.h.b16 %v2044
        %v2421 = vunpack.c.l.b16 %v2045
        %v2422 = vunpack.c.h.b16 %v2045
        %v2423 = vunpack.c.l.b16 %v2046
        %v2424 = vunpack.c.h.b16 %v2046
        %v2425 = vunpack.c.l.b16 %v2047
        %v2426 = vunpack.c.h.b16 %v2047
        %v2427 = vunpack.c.l.b16 %v2048
        %v2428 = vunpack.c.h.b16 %v2048
        %v2429 = vunpack.c.l.b16 %v2049
        %v2430 = vunpack.c.h.b16 %v2049
        %v2431 = vunpack.c.l.b16 %v2050
        %v2432 = vunpack.c.h.b16 %v2050
        %v2433 = vunpack.c.l.b16 %v2051
        %v2434 = vunpack.c.h.b16 %v2051
        %v2435 = vunpack.c.l.b16 %v2052
        %v2436 = vunpack.c.h.b16 %v2052
        %v2437 = vunpack.c.l.b16 %v2053
        %v2438 = vunpack.c.h.b16 %v2053
        %v2439 = vunpack.c.l.b16 %v2054
        %v2440 = vunpack.c.h.b16 %v2054
        %v2441 = vunpack.c.l.b16 %v2055
        %v2442 = vunpack.c.h.b16 %v2055
        %v2443 = vunpack.c.l.b16 %v2056
        %v2444 = vunpack.c.h.b16 %v2056
        %v2445 = vunpack.c.l.b16 %v2057
        %v2446 = vunpack.c.h.b16 %v2057
        %v2447 = vunpack.c.l.b16 %v2058
        %v2448 = vunpack.c.h.b16 %v2058
        %v2449 = vunpack.c.l.b16 %v2059
        %v2450 = vunpack.c.h.b16 %v2059
        %v2451 = vunpack.c.l.b16 %v2060
        %v2452 = vunpack.c.h.b16 %v2060
        %v2453 = vunpack.c.l.b16 %v2061
        %v2454 = vunpack.c.h.b16 %v2061
        %v2455 = vunpack.c.l.b16 %v2062
        %v2456 = vunpack.c.h.b16 %v2062
        %v2457 = vpack.c.b16 %v2205, %v2201
        %v2458 = vpack.c.b16 %v2206, %v2202
        %v2459 = vpack.c.b16 %v2207, %v2203
        %v2460 = vpack.c.b16 %v2208, %v2204
        %v2461 = vpack.c.b16 %v2213, %v2209
        %v2462 = vpack.c.b16 %v2214, %v2210
        %v2463 = vpack.c.b16 %v2215, %v2211
        %v2464 = vpack.c.b16 %v2216, %v2212
        %v2465 = vpack.c.b16 %v2221, %v2217
        %v2466 = vpack.c.b16 %v2222, %v2218
        %v2467 = vpack.c.b16 %v2223, %v2219
        %v2468 = vpack.c.b16 %v2224, %v2220
        %v2469 = vpack.c.b16 %v2229, %v2225
        %v2470 = vpack.c.b16 %v2230, %v2226
        %v2471 = vpack.c.b16 %v2231, %v2227
        %v2472 = vpack.c.b16 %v2232, %v2228
        %v2473 = vpack.c.b16 %v2237, %v2233
        %v2474 = vpack.c.b16 %v2238, %v2234
        %v2475 = vpack.c.b16 %v2239, %v2235
        %v2476 = vpack.c.b16 %v2240, %v2236
        %v2477 = vpack.c.b16 %v2245, %v2241
        %v2478 = vpack.c.b16 %v2246, %v2242
        %v2479 = vpack.c.b16 %v2247, %v2243
        %v2480 = vpack.c.b16 %v2248, %v2244
        %v2481 = vpack.c.b16 %v2253, %v2249
        %v2482 = vpack.c.b16 %v2254, %v2250
        %v2483 = vpack.c.b16 %v2255, %v2251
        %v2484 = vpack.c.b16 %v2256, %v2252
        %v2485 = vpack.c.b16 %v2261, %v2257
        %v2486 = vpack.c.b16 %v2262, %v2258
        %v2487 = vpack.c.b16 %v2263, %v2259
        %v2488 = vpack.c.b16 %v2264, %v2260
        %v2489 = vpack.c.b16 %v2269, %v2265
        %v2490 = vpack.c.b16 %v2270, %v2266
        %v2491 = vpack.c.b16 %v2271, %v2267
        %v2492 = vpack.c.b16 %v2272, %v2268
        %v2493 = vpack.c.b16 %v2277, %v2273
        %v2494 = vpack.c.b16 %v2278, %v2274
        %v2495 = vpack.c.b16 %v2279, %v2275
        %v2496 = vpack.c.b16 %v2280, %v2276
        %v2497 = vpack.c.b16 %v2285, %v2281
        %v2498 = vpack.c.b16 %v2286, %v2282
        %v2499 = vpack.c.b16 %v2287, %v2283
        %v2500 = vpack.c.b16 %v2288, %v2284
        %v2501 = vpack.c.b16 %v2293, %v2289
        %v2502 = vpack.c.b16 %v2294, %v2290
        %v2503 = vpack.c.b16 %v2295, %v2291
        %v2504 = vpack.c.b16 %v2296, %v2292
        %v2505 = vpack.c.b16 %v2301, %v2297
        %v2506 = vpack.c.b16 %v2302, %v2298
        %v2507 = vpack.c.b16 %v2303, %v2299
        %v2508 = vpack.c.b16 %v2304, %v2300
        %v2509 = vpack.c.b16 %v2309, %v2305
        %v2510 = vpack.c.b16 %v2310, %v2306
        %v2511 = vpack.c.b16 %v2311, %v2307
        %v2512 = vpack.c.b16 %v2312, %v2308
        %v2513 = vpack.c.b16 %v2317, %v2313
        %v2514 = vpack.c.b16 %v2318, %v2314
        %v2515 = vpack.c.b16 %v2319, %v2315
        %v2516 = vpack.c.b16 %v2320, %v2316
        %v2517 = vpack.c.b16 %v2325, %v2321
        %v2518 = vpack.c.b16 %v2326, %v2322
        %v2519 = vpack.c.b16 %v2327, %v2323
        %v2520 = vpack.c.b16 %v2328, %v2324
        %v2521 = vpack.c.b16 %v2333, %v2329
        %v2522 = vpack.c.b16 %v2334, %v2330
        %v2523 = vpack.c.b16 %v2335, %v2331
        %v2524 = vpack.c.b16 %v2336, %v2332
        %v2525 = vpack.c.b16 %v2341, %v2337
        %v2526 = vpack.c.b16 %v2342, %v2338
        %v2527 = vpack.c.b16 %v2343, %v2339
        %v2528 = vpack.c.b16 %v2344, %v2340
        %v2529 = vpack.c.b16 %v2349, %v2345
        %v2530 = vpack.c.b16 %v2350, %v2346
        %v2531 = vpack.c.b16 %v2351, %v2347
        %v2532 = vpack.c.b16 %v2352, %v2348
        %v2533 = vpack.c.b16 %v2357, %v2353
        %v2534 = vpack.c.b16 %v2358, %v2354
        %v2535 = vpack.c.b16 %v2359, %v2355
        %v2536 = vpack.c.b16 %v2360, %v2356
        %v2537 = vpack.c.b16 %v2365, %v2361
        %v2538 = vpack.c.b16 %v2366, %v2362
        %v2539 = vpack.c.b16 %v2367, %v2363
        %v2540 = vpack.c.b16 %v2368, %v2364
        %v2541 = vpack.c.b16 %v2373, %v2369
        %v2542 = vpack.c.b16 %v2374, %v2370
        %v2543 = vpack.c.b16 %v2375, %v2371
        %v2544 = vpack.c.b16 %v2376, %v2372
        %v2545 = vpack.c.b16 %v2381, %v2377
        %v2546 = vpack.c.b16 %v2382, %v2378
        %v2547 = vpack.c.b16 %v2383, %v2379
        %v2548 = vpack.c.b16 %v2384, %v2380
        %v2549 = vpack.c.b16 %v2389, %v2385
        %v2550 = vpack.c.b16 %v2390, %v2386
        %v2551 = vpack.c.b16 %v2391, %v2387
        %v2552 = vpack.c.b16 %v2392, %v2388
        %v2553 = vpack.c.b16 %v2397, %v2393
        %v2554 = vpack.c.b16 %v2398, %v2394
        %v2555 = vpack.c.b16 %v2399, %v2395
        %v2556 = vpack.c.b16 %v2400, %v2396
        %v2557 = vpack.c.b16 %v2405, %v2401
        %v2558 = vpack.c.b16 %v2406, %v2402
        %v2559 = vpack.c.b16 %v2407, %v2403
        %v2560 = vpack.c.b16 %v2408, %v2404
        %v2561 = vpack.c.b16 %v2413, %v2409
        %v2562 = vpack.c.b16 %v2414, %v2410
        %v2563 = vpack.c.b16 %v2415, %v2411
        %v2564 = vpack.c.b16 %v2416, %v2412
        %v2565 = vpack.c.b16 %v2421, %v2417
        %v2566 = vpack.c.b16 %v2422, %v2418
        %v2567 = vpack.c.b16 %v2423, %v2419
        %v2568 = vpack.c.b16 %v2424, %v2420
        %v2569 = vpack.c.b16 %v2429, %v2425
        %v2570 = vpack.c.b16 %v2430, %v2426
        %v2571 = vpack.c.b16 %v2431, %v2427
        %v2572 = vpack.c.b16 %v2432, %v2428
        %v2573 = vpack.c.b16 %v2437, %v2433
        %v2574 = vpack.c.b16 %v2438, %v2434
        %v2575 = vpack.c.b16 %v2439, %v2435
        %v2576 = vpack.c.b16 %v2440, %v2436
        %v2577 = vpack.c.b16 %v2445, %v2441
        %v2578 = vpack.c.b16 %v2446, %v2442
        %v2579 = vpack.c.b16 %v2447, %v2443
        %v2580 = vpack.c.b16 %v2448, %v2444
        %v2581 = vpack.c.b16 %v2453, %v2449
        %v2582 = vpack.c.b16 %v2454, %v2450
        %v2583 = vpack.c.b16 %v2455, %v2451
        %v2584 = vpack.c.b16 %v2456, %v2452
        %2713 = vmatpush.bf16.msra.mxu0 %v2485
        %2714 = vmatpush.bf16.msra.mxu0 %v2481
        %2715 = vmatpush.bf16.msra.mxu0 %v2477
        %2716 = vmatpush.bf16.msra.mxu0 %v2473
        %2717 = vmatpush.bf16.msra.mxu0 %v2469
        %2718 = vmatpush.bf16.msra.mxu0 %v2465
        %2719 = vmatpush.bf16.msra.mxu0 %v2461
        %2720 = vmatpush.bf16.msra.mxu0 %v2457
        %2721 = vmatmul.bf16.gmra.mxu0 %v1931
        %v2722 = vpop.f32.mrf.mxu0
        %v2723 = vadd.f32 %v2065, %v2722
        %v2724 = vpop.f32.mrf.mxu0
        %v2725 = vadd.f32 %v2065, %v2724
        %2726 = vdwg.mxu0
        %2727 = vmatpush.bf16.msra.mxu0 %v2517
        %2728 = vmatpush.bf16.msra.mxu0 %v2513
        %2729 = vmatpush.bf16.msra.mxu0 %v2509
        %2730 = vmatpush.bf16.msra.mxu0 %v2505
        %2731 = vmatpush.bf16.msra.mxu0 %v2501
        %2732 = vmatpush.bf16.msra.mxu0 %v2497
        %2733 = vmatpush.bf16.msra.mxu0 %v2493
        %2734 = vmatpush.bf16.msra.mxu0 %v2489
        %2735 = vmatmul.bf16.gmra.mxu0 %v1932
        %v2736 = vpop.f32.mrf.mxu0
        %v2737 = vadd.f32 %v2723, %v2736
        %v2738 = vpop.f32.mrf.mxu0
        %v2739 = vadd.f32 %v2725, %v2738
        %2740 = vdwg.mxu0
        %2741 = vmatpush.bf16.msra.mxu0 %v2549
        %2742 = vmatpush.bf16.msra.mxu0 %v2545
        %2743 = vmatpush.bf16.msra.mxu0 %v2541
        %2744 = vmatpush.bf16.msra.mxu0 %v2537
        %2745 = vmatpush.bf16.msra.mxu0 %v2533
        %2746 = vmatpush.bf16.msra.mxu0 %v2529
        %2747 = vmatpush.bf16.msra.mxu0 %v2525
        %2748 = vmatpush.bf16.msra.mxu0 %v2521
        %2749 = vmatmul.bf16.gmra.mxu0 %v1933
        %v2750 = vpop.f32.mrf.mxu0
        %v2751 = vadd.f32 %v2737, %v2750
        %v2752 = vpop.f32.mrf.mxu0
        %v2753 = vadd.f32 %v2739, %v2752
        %2754 = vdwg.mxu0
        %2755 = vmatpush.bf16.msra.mxu0 %v2581
        %2756 = vmatpush.bf16.msra.mxu0 %v2577
        %2757 = vmatpush.bf16.msra.mxu0 %v2573
        %2758 = vmatpush.bf16.msra.mxu0 %v2569
        %2759 = vmatpush.bf16.msra.mxu0 %v2565
        %2760 = vmatpush.bf16.msra.mxu0 %v2561
        %2761 = vmatpush.bf16.msra.mxu0 %v2557
        %2762 = vmatpush.bf16.msra.mxu0 %v2553
        %2763 = vmatmul.bf16.gmra.mxu0 %v1934
        %v2764 = vpop.f32.mrf.mxu0
        %v2765 = vadd.f32 %v2751, %v2764
        %v2766 = vpop.f32.mrf.mxu0
        %v2767 = vadd.f32 %v2753, %v2766
        %2768 = vdwg.mxu0
        %2769 = vmatpush.bf16.msra.mxu0 %v2486
        %2770 = vmatpush.bf16.msra.mxu0 %v2482
        %2771 = vmatpush.bf16.msra.mxu0 %v2478
        %2772 = vmatpush.bf16.msra.mxu0 %v2474
        %2773 = vmatpush.bf16.msra.mxu0 %v2470
        %2774 = vmatpush.bf16.msra.mxu0 %v2466
        %2775 = vmatpush.bf16.msra.mxu0 %v2462
        %2776 = vmatpush.bf16.msra.mxu0 %v2458
        %2777 = vmatmul.bf16.gmra.mxu0 %v1931
        %v2778 = vpop.f32.mrf.mxu0
        %v2779 = vadd.f32 %v2066, %v2778
        %v2780 = vpop.f32.mrf.mxu0
        %v2781 = vadd.f32 %v2066, %v2780
        %2782 = vdwg.mxu0
        %2783 = vmatpush.bf16.msra.mxu0 %v2518
        %2784 = vmatpush.bf16.msra.mxu0 %v2514
        %2785 = vmatpush.bf16.msra.mxu0 %v2510
        %2786 = vmatpush.bf16.msra.mxu0 %v2506
        %2787 = vmatpush.bf16.msra.mxu0 %v2502
        %2788 = vmatpush.bf16.msra.mxu0 %v2498
        %2789 = vmatpush.bf16.msra.mxu0 %v2494
        %2790 = vmatpush.bf16.msra.mxu0 %v2490
        %2791 = vmatmul.bf16.gmra.mxu0 %v1932
        %v2792 = vpop.f32.mrf.mxu0
        %v2793 = vadd.f32 %v2779, %v2792
        %v2794 = vpop.f32.mrf.mxu0
        %v2795 = vadd.f32 %v2781, %v2794
        %2796 = vdwg.mxu0
        %2797 = vmatpush.bf16.msra.mxu0 %v2550
        %2798 = vmatpush.bf16.msra.mxu0 %v2546
        %2799 = vmatpush.bf16.msra.mxu0 %v2542
        %2800 = vmatpush.bf16.msra.mxu0 %v2538
        %2801 = vmatpush.bf16.msra.mxu0 %v2534
        %2802 = vmatpush.bf16.msra.mxu0 %v2530
        %2803 = vmatpush.bf16.msra.mxu0 %v2526
        %2804 = vmatpush.bf16.msra.mxu0 %v2522
        %2805 = vmatmul.bf16.gmra.mxu0 %v1933
        %v2806 = vpop.f32.mrf.mxu0
        %v2807 = vadd.f32 %v2793, %v2806
        %v2808 = vpop.f32.mrf.mxu0
        %v2809 = vadd.f32 %v2795, %v2808
        %2810 = vdwg.mxu0
        %2811 = vmatpush.bf16.msra.mxu0 %v2582
        %2812 = vmatpush.bf16.msra.mxu0 %v2578
        %2813 = vmatpush.bf16.msra.mxu0 %v2574
        %2814 = vmatpush.bf16.msra.mxu0 %v2570
        %2815 = vmatpush.bf16.msra.mxu0 %v2566
        %2816 = vmatpush.bf16.msra.mxu0 %v2562
        %2817 = vmatpush.bf16.msra.mxu0 %v2558
        %2818 = vmatpush.bf16.msra.mxu0 %v2554
        %2819 = vmatmul.bf16.gmra.mxu0 %v1934
        %v2820 = vpop.f32.mrf.mxu0
        %v2821 = vadd.f32 %v2807, %v2820
        %v2822 = vpop.f32.mrf.mxu0
        %v2823 = vadd.f32 %v2809, %v2822
        %2824 = vdwg.mxu0
        %2825 = vmatpush.bf16.msra.mxu0 %v2487
        %2826 = vmatpush.bf16.msra.mxu0 %v2483
        %2827 = vmatpush.bf16.msra.mxu0 %v2479
        %2828 = vmatpush.bf16.msra.mxu0 %v2475
        %2829 = vmatpush.bf16.msra.mxu0 %v2471
        %2830 = vmatpush.bf16.msra.mxu0 %v2467
        %2831 = vmatpush.bf16.msra.mxu0 %v2463
        %2832 = vmatpush.bf16.msra.mxu0 %v2459
        %2833 = vmatmul.bf16.gmra.mxu0 %v1931
        %v2834 = vpop.f32.mrf.mxu0
        %v2835 = vadd.f32 %v2067, %v2834
        %v2836 = vpop.f32.mrf.mxu0
        %v2837 = vadd.f32 %v2067, %v2836
        %2838 = vdwg.mxu0
        %2839 = vmatpush.bf16.msra.mxu0 %v2519
        %2840 = vmatpush.bf16.msra.mxu0 %v2515
        %2841 = vmatpush.bf16.msra.mxu0 %v2511
        %2842 = vmatpush.bf16.msra.mxu0 %v2507
        %2843 = vmatpush.bf16.msra.mxu0 %v2503
        %2844 = vmatpush.bf16.msra.mxu0 %v2499
        %2845 = vmatpush.bf16.msra.mxu0 %v2495
        %2846 = vmatpush.bf16.msra.mxu0 %v2491
        %2847 = vmatmul.bf16.gmra.mxu0 %v1932
        %v2848 = vpop.f32.mrf.mxu0
        %v2849 = vadd.f32 %v2835, %v2848
        %v2850 = vpop.f32.mrf.mxu0
        %v2851 = vadd.f32 %v2837, %v2850
        %2852 = vdwg.mxu0
        %2853 = vmatpush.bf16.msra.mxu0 %v2551
        %2854 = vmatpush.bf16.msra.mxu0 %v2547
        %2855 = vmatpush.bf16.msra.mxu0 %v2543
        %2856 = vmatpush.bf16.msra.mxu0 %v2539
        %2857 = vmatpush.bf16.msra.mxu0 %v2535
        %2858 = vmatpush.bf16.msra.mxu0 %v2531
        %2859 = vmatpush.bf16.msra.mxu0 %v2527
        %2860 = vmatpush.bf16.msra.mxu0 %v2523
        %2861 = vmatmul.bf16.gmra.mxu0 %v1933
        %v2862 = vpop.f32.mrf.mxu0
        %v2863 = vadd.f32 %v2849, %v2862
        %v2864 = vpop.f32.mrf.mxu0
        %v2865 = vadd.f32 %v2851, %v2864
        %2866 = vdwg.mxu0
        %2867 = vmatpush.bf16.msra.mxu0 %v2583
        %2868 = vmatpush.bf16.msra.mxu0 %v2579
        %2869 = vmatpush.bf16.msra.mxu0 %v2575
        %2870 = vmatpush.bf16.msra.mxu0 %v2571
        %2871 = vmatpush.bf16.msra.mxu0 %v2567
        %2872 = vmatpush.bf16.msra.mxu0 %v2563
        %2873 = vmatpush.bf16.msra.mxu0 %v2559
        %2874 = vmatpush.bf16.msra.mxu0 %v2555
        %2875 = vmatmul.bf16.gmra.mxu0 %v1934
        %v2876 = vpop.f32.mrf.mxu0
        %v2877 = vadd.f32 %v2863, %v2876
        %v2878 = vpop.f32.mrf.mxu0
        %v2879 = vadd.f32 %v2865, %v2878
        %2880 = vdwg.mxu0
        %2881 = vmatpush.bf16.msra.mxu0 %v2488
        %2882 = vmatpush.bf16.msra.mxu0 %v2484
        %2883 = vmatpush.bf16.msra.mxu0 %v2480
        %2884 = vmatpush.bf16.msra.mxu0 %v2476
        %2885 = vmatpush.bf16.msra.mxu0 %v2472
        %2886 = vmatpush.bf16.msra.mxu0 %v2468
        %2887 = vmatpush.bf16.msra.mxu0 %v2464
        %2888 = vmatpush.bf16.msra.mxu0 %v2460
        %2889 = vmatmul.bf16.gmra.mxu0 %v1931
        %v2890 = vpop.f32.mrf.mxu0
        %v2891 = vadd.f32 %v2068, %v2890
        %v2892 = vpop.f32.mrf.mxu0
        %v2893 = vadd.f32 %v2068, %v2892
        %2894 = vdwg.mxu0
        %2895 = vmatpush.bf16.msra.mxu0 %v2520
        %2896 = vmatpush.bf16.msra.mxu0 %v2516
        %2897 = vmatpush.bf16.msra.mxu0 %v2512
        %2898 = vmatpush.bf16.msra.mxu0 %v2508
        %2899 = vmatpush.bf16.msra.mxu0 %v2504
        %2900 = vmatpush.bf16.msra.mxu0 %v2500
        %2901 = vmatpush.bf16.msra.mxu0 %v2496
        %2902 = vmatpush.bf16.msra.mxu0 %v2492
        %2903 = vmatmul.bf16.gmra.mxu0 %v1932
        %v2904 = vpop.f32.mrf.mxu0
        %v2905 = vadd.f32 %v2891, %v2904
        %v2906 = vpop.f32.mrf.mxu0
        %v2907 = vadd.f32 %v2893, %v2906
        %2908 = vdwg.mxu0
        %2909 = vmatpush.bf16.msra.mxu0 %v2552
        %2910 = vmatpush.bf16.msra.mxu0 %v2548
        %2911 = vmatpush.bf16.msra.mxu0 %v2544
        %2912 = vmatpush.bf16.msra.mxu0 %v2540
        %2913 = vmatpush.bf16.msra.mxu0 %v2536
        %2914 = vmatpush.bf16.msra.mxu0 %v2532
        %2915 = vmatpush.bf16.msra.mxu0 %v2528
        %2916 = vmatpush.bf16.msra.mxu0 %v2524
        %2917 = vmatmul.bf16.gmra.mxu0 %v1933
        %v2918 = vpop.f32.mrf.mxu0
        %v2919 = vadd.f32 %v2905, %v2918
        %v2920 = vpop.f32.mrf.mxu0
        %v2921 = vadd.f32 %v2907, %v2920
        %2922 = vdwg.mxu0
        %2923 = vmatpush.bf16.msra.mxu0 %v2584
        %2924 = vmatpush.bf16.msra.mxu0 %v2580
        %2925 = vmatpush.bf16.msra.mxu0 %v2576
        %2926 = vmatpush.bf16.msra.mxu0 %v2572
        %2927 = vmatpush.bf16.msra.mxu0 %v2568
        %2928 = vmatpush.bf16.msra.mxu0 %v2564
        %2929 = vmatpush.bf16.msra.mxu0 %v2560
        %2930 = vmatpush.bf16.msra.mxu0 %v2556
        %2931 = vmatmul.bf16.gmra.mxu0 %v1934
        %v2932 = vpop.f32.mrf.mxu0
        %v2933 = vadd.f32 %v2919, %v2932
        %v2934 = vpop.f32.mrf.mxu0
        %v2935 = vadd.f32 %v2921, %v2934
        %2936 = vdwg.mxu0
        %v2937 = vmax.f32 %v2765, 0.0
        %v2938 = vmax.f32 %v2821, 0.0
        %v2939 = vmax.f32 %v2877, 0.0
        %v2940 = vmax.f32 %v2933, 0.0
        %v2941 = vmax.f32 %v2767, 0.0
        %v2942 = vmax.f32 %v2823, 0.0
        %v2943 = vmax.f32 %v2879, 0.0
        %v2944 = vmax.f32 %v2935, 0.0
        %v2945 = vpack.c.bf16 %v2941, %v2937
        %v2946 = vpack.c.bf16 %v2942, %v2938
        %v2947 = vpack.c.bf16 %v2943, %v2939
        %v2948 = vpack.c.bf16 %v2944, %v2940
        %v2949 = vld [vmem:[#allocation4] sm:$0xf]
        %v2950 = vld [vmem:[#allocation4 + $0x4] sm:$0xf]
        %v2951 = vld [vmem:[#allocation4 + $0x8] sm:$0xf]
        %v2952 = vld [vmem:[#allocation4 + $0xc] sm:$0xf]
        %v2953 = vld [vmem:[#allocation4 + $0x10] sm:$0xf]
        %v2954 = vld [vmem:[#allocation4 + $0x14] sm:$0xf]
        %v2955 = vld [vmem:[#allocation4 + $0x18] sm:$0xf]
        %v2956 = vld [vmem:[#allocation4 + $0x1c] sm:$0xf]
        %v2957 = vld [vmem:[#allocation4 + $0x20] sm:$0xf]
        %v2958 = vld [vmem:[#allocation4 + $0x24] sm:$0xf]
        %v2959 = vld [vmem:[#allocation4 + $0x28] sm:$0xf]
        %v2960 = vld [vmem:[#allocation4 + $0x2c] sm:$0xf]
        %v2961 = vld [vmem:[#allocation4 + $0x30] sm:$0xf]
        %v2962 = vld [vmem:[#allocation4 + $0x34] sm:$0xf]
        %v2963 = vld [vmem:[#allocation4 + $0x38] sm:$0xf]
        %v2964 = vld [vmem:[#allocation4 + $0x3c] sm:$0xf]
        %v2965 = vld [vmem:[#allocation4 + $0x40] sm:$0xf]
        %v2966 = vld [vmem:[#allocation4 + $0x44] sm:$0xf]
        %v2967 = vld [vmem:[#allocation4 + $0x48] sm:$0xf]
        %v2968 = vld [vmem:[#allocation4 + $0x4c] sm:$0xf]
        %v2969 = vld [vmem:[#allocation4 + $0x50] sm:$0xf]
        %v2970 = vld [vmem:[#allocation4 + $0x54] sm:$0xf]
        %v2971 = vld [vmem:[#allocation4 + $0x58] sm:$0xf]
        %v2972 = vld [vmem:[#allocation4 + $0x5c] sm:$0xf]
        %v2973 = vld [vmem:[#allocation4 + $0x60] sm:$0xf]
        %v2974 = vld [vmem:[#allocation4 + $0x64] sm:$0xf]
        %v2975 = vld [vmem:[#allocation4 + $0x68] sm:$0xf]
        %v2976 = vld [vmem:[#allocation4 + $0x6c] sm:$0xf]
        %v2977 = vld [vmem:[#allocation4 + $0x70] sm:$0xf]
        %v2978 = vld [vmem:[#allocation4 + $0x74] sm:$0xf]
        %v2979 = vld [vmem:[#allocation4 + $0x78] sm:$0xf]
        %v2980 = vld [vmem:[#allocation4 + $0x7c] sm:$0xf]
        %v2981 = vld [vmem:[#allocation4 + $0x80] sm:$0xf]
        %v2982 = vld [vmem:[#allocation4 + $0x84] sm:$0xf]
        %v2983 = vld [vmem:[#allocation4 + $0x88] sm:$0xf]
        %v2984 = vld [vmem:[#allocation4 + $0x8c] sm:$0xf]
        %v2985 = vld [vmem:[#allocation4 + $0x90] sm:$0xf]
        %v2986 = vld [vmem:[#allocation4 + $0x94] sm:$0xf]
        %v2987 = vld [vmem:[#allocation4 + $0x98] sm:$0xf]
        %v2988 = vld [vmem:[#allocation4 + $0x9c] sm:$0xf]
        %v2989 = vld [vmem:[#allocation4 + $0xa0] sm:$0xf]
        %v2990 = vld [vmem:[#allocation4 + $0xa4] sm:$0xf]
        %v2991 = vld [vmem:[#allocation4 + $0xa8] sm:$0xf]
        %v2992 = vld [vmem:[#allocation4 + $0xac] sm:$0xf]
        %v2993 = vld [vmem:[#allocation4 + $0xb0] sm:$0xf]
        %v2994 = vld [vmem:[#allocation4 + $0xb4] sm:$0xf]
        %v2995 = vld [vmem:[#allocation4 + $0xb8] sm:$0xf]
        %v2996 = vld [vmem:[#allocation4 + $0xbc] sm:$0xf]
        %v2997 = vld [vmem:[#allocation4 + $0xc0] sm:$0xf]
        %v2998 = vld [vmem:[#allocation4 + $0xc4] sm:$0xf]
        %v2999 = vld [vmem:[#allocation4 + $0xc8] sm:$0xf]
        %v3000 = vld [vmem:[#allocation4 + $0xcc] sm:$0xf]
        %v3001 = vld [vmem:[#allocation4 + $0xd0] sm:$0xf]
        %v3002 = vld [vmem:[#allocation4 + $0xd4] sm:$0xf]
        %v3003 = vld [vmem:[#allocation4 + $0xd8] sm:$0xf]
        %v3004 = vld [vmem:[#allocation4 + $0xdc] sm:$0xf]
        %v3005 = vld [vmem:[#allocation4 + $0xe0] sm:$0xf]
        %v3006 = vld [vmem:[#allocation4 + $0xe4] sm:$0xf]
        %v3007 = vld [vmem:[#allocation4 + $0xe8] sm:$0xf]
        %v3008 = vld [vmem:[#allocation4 + $0xec] sm:$0xf]
        %v3009 = vld [vmem:[#allocation4 + $0xf0] sm:$0xf]
        %v3010 = vld [vmem:[#allocation4 + $0xf4] sm:$0xf]
        %v3011 = vld [vmem:[#allocation4 + $0xf8] sm:$0xf]
        %v3012 = vld [vmem:[#allocation4 + $0xfc] sm:$0xf]
        %v3013 = vld [vmem:[%s6] sm:$0x1]
        %v3015 = vperm.slane %v3013, 0
        %v3081 = vunpack.c.l.b16 %v2949
        %v3082 = vunpack.c.l.b16 %v2950
        %v3083 = vunpack.c.l.b16 %v2951
        %v3084 = vunpack.c.l.b16 %v2952
        %v3085 = vunpack.c.l.b16 %v2953
        %v3086 = vunpack.c.l.b16 %v2954
        %v3087 = vunpack.c.l.b16 %v2955
        %v3088 = vunpack.c.l.b16 %v2956
        %v3089 = vunpack.c.l.b16 %v2957
        %v3090 = vunpack.c.l.b16 %v2958
        %v3091 = vunpack.c.l.b16 %v2959
        %v3092 = vunpack.c.l.b16 %v2960
        %v3093 = vunpack.c.l.b16 %v2961
        %v3094 = vunpack.c.l.b16 %v2962
        %v3095 = vunpack.c.l.b16 %v2963
        %v3096 = vunpack.c.l.b16 %v2964
        %v3097 = vunpack.c.l.b16 %v2965
        %v3098 = vunpack.c.l.b16 %v2966
        %v3099 = vunpack.c.l.b16 %v2967
        %v3100 = vunpack.c.l.b16 %v2968
        %v3101 = vunpack.c.l.b16 %v2969
        %v3102 = vunpack.c.l.b16 %v2970
        %v3103 = vunpack.c.l.b16 %v2971
        %v3104 = vunpack.c.l.b16 %v2972
        %v3105 = vunpack.c.l.b16 %v2973
        %v3106 = vunpack.c.l.b16 %v2974
        %v3107 = vunpack.c.l.b16 %v2975
        %v3108 = vunpack.c.l.b16 %v2976
        %v3109 = vunpack.c.l.b16 %v2977
        %v3110 = vunpack.c.l.b16 %v2978
        %v3111 = vunpack.c.l.b16 %v2979
        %v3112 = vunpack.c.l.b16 %v2980
        %v3113 = vunpack.c.l.b16 %v2981
        %v3114 = vunpack.c.l.b16 %v2982
        %v3115 = vunpack.c.l.b16 %v2983
        %v3116 = vunpack.c.l.b16 %v2984
        %v3117 = vunpack.c.l.b16 %v2985
        %v3118 = vunpack.c.l.b16 %v2986
        %v3119 = vunpack.c.l.b16 %v2987
        %v3120 = vunpack.c.l.b16 %v2988
        %v3121 = vunpack.c.l.b16 %v2989
        %v3122 = vunpack.c.l.b16 %v2990
        %v3123 = vunpack.c.l.b16 %v2991
        %v3124 = vunpack.c.l.b16 %v2992
        %v3125 = vunpack.c.l.b16 %v2993
        %v3126 = vunpack.c.l.b16 %v2994
        %v3127 = vunpack.c.l.b16 %v2995
        %v3128 = vunpack.c.l.b16 %v2996
        %v3129 = vunpack.c.l.b16 %v2997
        %v3130 = vunpack.c.l.b16 %v2998
        %v3131 = vunpack.c.l.b16 %v2999
        %v3132 = vunpack.c.l.b16 %v3000
        %v3133 = vunpack.c.l.b16 %v3001
        %v3134 = vunpack.c.l.b16 %v3002
        %v3135 = vunpack.c.l.b16 %v3003
        %v3136 = vunpack.c.l.b16 %v3004
        %v3137 = vunpack.c.l.b16 %v3005
        %v3138 = vunpack.c.l.b16 %v3006
        %v3139 = vunpack.c.l.b16 %v3007
        %v3140 = vunpack.c.l.b16 %v3008
        %v3141 = vunpack.c.l.b16 %v3009
        %v3142 = vunpack.c.l.b16 %v3010
        %v3143 = vunpack.c.l.b16 %v3011
        %v3144 = vunpack.c.l.b16 %v3012
        %v3145 = vpack.c.b16 %v3082, %v3081
        %v3146 = vpack.c.b16 %v3084, %v3083
        %v3147 = vpack.c.b16 %v3086, %v3085
        %v3148 = vpack.c.b16 %v3088, %v3087
        %v3149 = vpack.c.b16 %v3090, %v3089
        %v3150 = vpack.c.b16 %v3092, %v3091
        %v3151 = vpack.c.b16 %v3094, %v3093
        %v3152 = vpack.c.b16 %v3096, %v3095
        %v3153 = vpack.c.b16 %v3098, %v3097
        %v3154 = vpack.c.b16 %v3100, %v3099
        %v3155 = vpack.c.b16 %v3102, %v3101
        %v3156 = vpack.c.b16 %v3104, %v3103
        %v3157 = vpack.c.b16 %v3106, %v3105
        %v3158 = vpack.c.b16 %v3108, %v3107
        %v3159 = vpack.c.b16 %v3110, %v3109
        %v3160 = vpack.c.b16 %v3112, %v3111
        %v3161 = vpack.c.b16 %v3114, %v3113
        %v3162 = vpack.c.b16 %v3116, %v3115
        %v3163 = vpack.c.b16 %v3118, %v3117
        %v3164 = vpack.c.b16 %v3120, %v3119
        %v3165 = vpack.c.b16 %v3122, %v3121
        %v3166 = vpack.c.b16 %v3124, %v3123
        %v3167 = vpack.c.b16 %v3126, %v3125
        %v3168 = vpack.c.b16 %v3128, %v3127
        %v3169 = vpack.c.b16 %v3130, %v3129
        %v3170 = vpack.c.b16 %v3132, %v3131
        %v3171 = vpack.c.b16 %v3134, %v3133
        %v3172 = vpack.c.b16 %v3136, %v3135
        %v3173 = vpack.c.b16 %v3138, %v3137
        %v3174 = vpack.c.b16 %v3140, %v3139
        %v3175 = vpack.c.b16 %v3142, %v3141
        %v3176 = vpack.c.b16 %v3144, %v3143
        %3209 = vmatpush.bf16.msra.mxu0 %v3152
        %3210 = vmatpush.bf16.msra.mxu0 %v3151
        %3211 = vmatpush.bf16.msra.mxu0 %v3150
        %3212 = vmatpush.bf16.msra.mxu0 %v3149
        %3213 = vmatpush.bf16.msra.mxu0 %v3148
        %3214 = vmatpush.bf16.msra.mxu0 %v3147
        %3215 = vmatpush.bf16.msra.mxu0 %v3146
        %3216 = vmatpush.bf16.msra.mxu0 %v3145
        %3217 = vmatmul.bf16.gmra.mxu0 %v2945
        %v3218 = vpop.f32.mrf.mxu0
        %v3219 = vadd.f32 %v3015, %v3218
        %v3220 = vpop.f32.mrf.mxu0
        %v3221 = vadd.f32 %v3015, %v3220
        %3222 = vdwg.mxu0
        %3223 = vmatpush.bf16.msra.mxu0 %v3160
        %3224 = vmatpush.bf16.msra.mxu0 %v3159
        %3225 = vmatpush.bf16.msra.mxu0 %v3158
        %3226 = vmatpush.bf16.msra.mxu0 %v3157
        %3227 = vmatpush.bf16.msra.mxu0 %v3156
        %3228 = vmatpush.bf16.msra.mxu0 %v3155
        %3229 = vmatpush.bf16.msra.mxu0 %v3154
        %3230 = vmatpush.bf16.msra.mxu0 %v3153
        %3231 = vmatmul.bf16.gmra.mxu0 %v2946
        %v3232 = vpop.f32.mrf.mxu0
        %v3233 = vadd.f32 %v3219, %v3232
        %v3234 = vpop.f32.mrf.mxu0
        %v3235 = vadd.f32 %v3221, %v3234
        %3236 = vdwg.mxu0
        %3237 = vmatpush.bf16.msra.mxu0 %v3168
        %3238 = vmatpush.bf16.msra.mxu0 %v3167
        %3239 = vmatpush.bf16.msra.mxu0 %v3166
        %3240 = vmatpush.bf16.msra.mxu0 %v3165
        %3241 = vmatpush.bf16.msra.mxu0 %v3164
        %3242 = vmatpush.bf16.msra.mxu0 %v3163
        %3243 = vmatpush.bf16.msra.mxu0 %v3162
        %3244 = vmatpush.bf16.msra.mxu0 %v3161
        %3245 = vmatmul.bf16.gmra.mxu0 %v2947
        %v3246 = vpop.f32.mrf.mxu0
        %v3247 = vadd.f32 %v3233, %v3246
        %v3248 = vpop.f32.mrf.mxu0
        %v3249 = vadd.f32 %v3235, %v3248
        %3250 = vdwg.mxu0
        %3251 = vmatpush.bf16.msra.mxu0 %v3176
        %3252 = vmatpush.bf16.msra.mxu0 %v3175
        %3253 = vmatpush.bf16.msra.mxu0 %v3174
        %3254 = vmatpush.bf16.msra.mxu0 %v3173
        %3255 = vmatpush.bf16.msra.mxu0 %v3172
        %3256 = vmatpush.bf16.msra.mxu0 %v3171
        %3257 = vmatpush.bf16.msra.mxu0 %v3170
        %3258 = vmatpush.bf16.msra.mxu0 %v3169
        %3259 = vmatmul.bf16.gmra.mxu0 %v2948
        %v3260 = vpop.f32.mrf.mxu0
        %v3261 = vadd.f32 %v3247, %v3260
        %v3262 = vpop.f32.mrf.mxu0
        %v3263 = vadd.f32 %v3249, %v3262
        %3264 = vdwg.mxu0
        %3265 = vmax.xlane.f32.xlu0 %v3261
        %v3266 = vpop.xlane.xlu0 %3265
        %3267 = vmax.xlane.f32.xlu0 %v3263
        %v3268 = vpop.xlane.xlu0 %3267
        %v3269 = vsub.f32 %v3261, %v3266
        %v3270 = vsub.f32 %v3263, %v3268
        %v3271 = vmul.f32 %v3269, 1.442695
        %v3272 = vpow.pop %v3271
        %v3273 = vmul.f32 %v3270, 1.442695
        %v3274 = vpow.pop %v3273
        %3275 = vadd.xlane.f32.xlu0 %v3272
        %v3276 = vpop.xlane.xlu0 %3275
        %3277 = vadd.xlane.f32.xlu0 %v3274
        %v3278 = vpop.xlane.xlu0 %3277
        %v3279 = vrcp.pop %v3276
        %v3280 = vrcp.pop %v3278
        %v3281 = vmul.f32 %v3272, %v3279
        %v3282 = vmul.f32 %v3274, %v3280
        %v3283 = vpack.c.bf16 %v3281, %v3281
        %v3284 = vpack.c.bf16 %v3282, %v3282
        %3285 = vst [vmem:[%s317] sm:$0xf] %v3283
        %3286 = vst [vmem:[%s317 + $0x4] sm:$0xf] %v3284
        %s3287 = smul.u32 2, %s20
        %p3288 = scmp.lt.s32.totalorder %s3287, 5
        %s3289 = scalar_select %p3288, %s3287, 5
        %s3290 = smul.addr %s3289, 4
        %s3291 = scalar_lea.vmem %s7, %s3290
        // Predicated region
        $region57: #{mnist_net_forward.1} parent=47 // pred_check
          %p3292 = pneg %p190
        $region58: #{mnist_net_forward.1} parent=47 // pred_check_branch
          %3294 = sbr.rel (%p3292) target = $region60
        $region59: #{mnist_net_forward.1} parent=47 // pred_region
          %s3295 = smul.u32 2, %s20
        $region60: #{mnist_net_forward.1} parent=47 // pred_fallthru
          _
      $region48: #{mnist_net_forward.1} parent=5 // pred_fallthru
        _
      %p3296 = scmp.le.s32.totalorder 2, %s15
      // Predicated region
      $region61: #{mnist_net_forward.1} parent=5 // pred_check
        %p3297 = pneg %p3296
      $region62: #{mnist_net_forward.1} parent=5 // pred_check_branch
        %3299 = sbr.rel (%p3297) target = $region64
      $region63: #{mnist_net_forward.1} parent=5 // pred_region
        %s3300 = ssub.s32 %s15, 2
        // Predicated region
        $region65: #{mnist_net_forward.1} parent=63 // pred_check
          %p3301 = pneg %p196
        $region66: #{mnist_net_forward.1} parent=63 // pred_check_branch
          %3303 = sbr.rel (%p3301) target = $region68
        $region67: #{mnist_net_forward.1} parent=63 // pred_region
          %s3304 = smul.u32 2, %s21
          %p3305 = scmp.lt.s32.totalorder %s3304, 5
          %s3306 = scalar_select %p3305, %s3304, 5
          %s3307 = smul.addr %s3306, 4
          %s3308 = scalar_lea.vmem %s7, %s3307
        $region68: #{mnist_net_forward.1} parent=63 // pred_fallthru
          _
      $region64: #{mnist_net_forward.1} parent=5 // pred_fallthru
        _
    $region6: #{mnist_net_forward.1} parent=1 // loop_footer
      %s19 = sadd.s32 1, %s15
    $region7: #{mnist_net_forward.1} parent=1 // loop_footer_branch
      %14 = sbr.rel target = $region3
    $region8: #{mnist_net_forward.1} parent=1 // loop_exit
      _
    %3309 = vsyncpa [#allocation3], 1
    %s3310 = scalar_lea.sflag [#allocation3], 1
    %3311 = vsyncpa %s3310, 1
    %3312 = vsyncpa [#allocation5], 1

</llo_original>
